<compile_context>
chip_gen: v7x
topology: tpu7x:2x2x1
jax: 0.10.0
libtpu: 0.0.40
codegen_flags: <defaults>
</compile_context>

<pallas_src>
import functools

import jax
import jax.numpy as jnp
from jax import lax
from jax.experimental import pallas as pl
from jax.experimental.pallas import tpu as pltpu


# ----------------------------- fused conv + pool kernel -----------------------------

def tokenizer_block_kernel(xcol_ref, w_ref, sel_ref, o_ref, *,
                           Bblk, Hc, Wc, Hs, Ws, pool_k, pool_p, use_relu):
    # xcol_ref: (Bblk*Hc*Wc, K*K*Cin)  im2col rows for this batch block
    # w_ref:    (K*K*Cin, Cout)        conv weight as a single matmul RHS
    # sel_ref:  (N, Hs*Ws)             0/1 stride-2 subsample / flatten / transpose matrix
    # o_ref:    (Bblk, N, Cout)        output tokens
    cout = w_ref.shape[-1]

    # ---- Conv2d (bias=False) as ONE im2col matmul on the MXU, f32 accumulation ----
    conv = jnp.dot(xcol_ref[...], w_ref[...], preferred_element_type=jnp.float32)
    if use_relu:                        # module default activation=None -> Identity
        conv = jnp.maximum(conv, 0.0)
    conv = conv.reshape(Bblk, Hc, Wc, cout)

    # ---- MaxPool2d(pool_k, pool_s, pool_p), separable, replicate-edge padding ----
    # (replicate padding == PyTorch's -inf padding here: every pooling window contains
    #  at least one valid conv value, so the replicated edge value never changes the max)
    # W direction (sublane axis): pool_k shifted slices of the edge-padded map.
    padw = jnp.concatenate(
        [conv[:, :, :1, :]] * pool_p + [conv] + [conv[:, :, -1:, :]] * pool_p, axis=2)
    wmax = padw[:, :, 0:Ws, :]
    for d in range(1, pool_k):
        wmax = jnp.maximum(wmax, padw[:, :, d:d + Ws, :])
    # H direction (leading axis: whole-vreg-row selects, cheap).
    padh = jnp.concatenate(
        [wmax[:, :1]] * pool_p + [wmax] + [wmax[:, -1:]] * pool_p, axis=1)
    hmax = padh[:, 0:Hs]
    for d in range(1, pool_k):
        hmax = jnp.maximum(hmax, padh[:, d:d + Hs])

    # ---- stride-2 subsample + flatten + transpose: one lane-dense selection matmul ----
    for b in range(Bblk):               # static tiny unroll (Bblk is small)
        pooled = jnp.dot(sel_ref[...], hmax[b].reshape(Hs * Ws, cout),
                         preferred_element_type=jnp.float32)     # (N, Cout)
        o_ref[b] = pooled.astype(o_ref.dtype)


# ----------------------------- wrappers -----------------------------

def _conv_pool_block(x_nhwc, weight, *, stride, padding, pool_k, pool_s, pool_p,
                     use_relu, batch_block=None):
    """One Tokenizer conv block (Conv2d -> activation -> MaxPool) as one pallas_call."""
    B, H, W, Cin = x_nhwc.shape
    Cout, Cin_w, K, _ = weight.shape
    assert Cin_w == Cin

    Hc = (H + 2 * padding - K) // stride + 1
    Wc = (W + 2 * padding - K) // stride + 1
    Hs = Hc + 2 * pool_p - pool_k + 1          # number of stride-1 pooling positions
    Ws = Wc + 2 * pool_p - pool_k + 1
    Hp = (Hc + 2 * pool_p - pool_k) // pool_s + 1
    Wp = (Wc + 2 * pool_p - pool_k) // pool_s + 1
    N = Hp * Wp

    # Whole batch in one grid step by default (single-TC v5e/v6e); on v7x pass
    # batch_block=cdiv(B, 2) to keep two "parallel" steps for the two TensorCores.
    Bblk = B if batch_block is None else batch_block
    assert B % Bblk == 0, (B, Bblk)
    grid = (B // Bblk,)

    # ---- im2col in the wrapper (tiny XLA glue; kernel LHS arrives lane-contiguous) ----
    xp = jnp.pad(x_nhwc, ((0, 0), (padding, padding), (padding, padding), (0, 0)))
    cols = []
    for kh in range(K):
        for kw in range(K):
            cols.append(xp[:, kh:kh + stride * Hc:stride, kw:kw + stride * Wc:stride, :])
    x_cols = jnp.concatenate(cols, axis=-1).reshape(B * Hc * Wc, K * K * Cin)
    x_cols = x_cols.astype(jnp.float32)

    # conv weight as a single (K*K*Cin, Cout) RHS, row order matching the im2col columns
    w_mat = jnp.transpose(weight, (2, 3, 1, 0)).reshape(K * K * Cin, Cout).astype(jnp.float32)

    # constant 0/1 selection matrix: output token r = (hp, wp) picks stride-1 window
    # position (pool_s*hp, pool_s*wp) of the flattened (Hs, Ws) pooled map.
    r = jnp.arange(N)
    src = (pool_s * (r // Wp)) * Ws + pool_s * (r % Wp)
    sel = jax.nn.one_hot(src, Hs * Ws, dtype=jnp.float32)        # (N, Hs*Ws)

    kernel = functools.partial(
        tokenizer_block_kernel, Bblk=Bblk, Hc=Hc, Wc=Wc, Hs=Hs, Ws=Ws,
        pool_k=pool_k, pool_p=pool_p, use_relu=use_relu)

    tokens = pl.pallas_call(
        kernel,
        out_shape=jax.ShapeDtypeStruct((B, N, Cout), x_nhwc.dtype),
        grid=grid,
        in_specs=[
            pl.BlockSpec((Bblk * Hc * Wc, K * K * Cin), lambda b: (b, 0)),
            pl.BlockSpec((K * K * Cin, Cout), lambda b: (0, 0)),
            pl.BlockSpec((N, Hs * Ws), lambda b: (0, 0)),
        ],
        out_specs=pl.BlockSpec((Bblk, N, Cout), lambda b: (b, 0, 0)),
        compiler_params=pltpu.CompilerParams(dimension_semantics=("parallel",)),
    )(x_cols, w_mat, sel)
    return tokens, (Hp, Wp)


def tokenizer_forward(x_nchw, weights, *, stride=1, padding=1,
                      pool_k=3, pool_s=2, pool_p=1, activation=None, batch_block=None):
    """Tokenizer.forward: (B, Cin, H, W) -> (B, seq_len, n_output_channels)."""
    # TODO(synk): max_pool=False variant (no pooling stage) is not wired up; the module
    # default (max_pool=True) is what this implements.
    x = jnp.transpose(x_nchw, (0, 2, 3, 1))          # NCHW -> NHWC (channels in lanes)
    use_relu = activation == "relu"
    tokens = None
    for w in weights:                                 # n_conv_layers blocks
        tokens, (Hp, Wp) = _conv_pool_block(
            x, w, stride=stride, padding=padding,
            pool_k=pool_k, pool_s=pool_s, pool_p=pool_p,
            use_relu=use_relu, batch_block=batch_block)
        B, N, C = tokens.shape
        x = tokens.reshape(B, Hp, Wp, C)              # spatial layout for a next block
    return tokens


# ----------------------------- pure-JAX reference (for self-check) -----------------------------

def tokenizer_reference(x_nchw, weights, *, stride=1, padding=1,
                        pool_k=3, pool_s=2, pool_p=1, activation=None):
    x = x_nchw
    for w in weights:
        x = lax.conv_general_dilated(
            x, w, window_strides=(stride, stride),
            padding=((padding, padding), (padding, padding)),
            dimension_numbers=("NCHW", "OIHW", "NCHW"))
        if activation == "relu":
            x = jnp.maximum(x, 0.0)
        x = lax.reduce_window(
            x, -jnp.inf, lax.max,
            window_dimensions=(1, 1, pool_k, pool_k),
            window_strides=(1, 1, pool_s, pool_s),
            padding=((0, 0), (0, 0), (pool_p, pool_p), (pool_p, pool_p)))
    B, C, Hp, Wp = x.shape
    return x.reshape(B, C, Hp * Wp).transpose(0, 2, 1)


# ----------------------------- main -----------------------------

if __name__ == "__main__":
    # CIFAR-10 CCT tokenizer config: kernel=3, stride=1, padding=1, maxpool(3,2,1),
    # n_conv_layers=1, activation=None (Identity), bias=False.
    B, Cin, H, W = 2, 3, 16, 16
    Cout = 128                      # n_output_channels (embedding dim) — lane-dense output
    K, STRIDE, PAD = 3, 1, 1

    key = jax.random.PRNGKey(0)
    kx, kw = jax.random.split(key)
    x = jax.random.normal(kx, (B, Cin, H, W), jnp.float32)
    # kaiming_normal_ (fan_in mode, gain sqrt(2)) as in Tokenizer.init_weight
    fan_in = Cin * K * K
    weight = jax.random.normal(kw, (Cout, Cin, K, K), jnp.float32) * (2.0 / fan_in) ** 0.5
    weights = [weight]

    out = tokenizer_forward(x, weights, stride=STRIDE, padding=PAD)
    out = jax.block_until_ready(out)

    ref = tokenizer_reference(x, weights, stride=STRIDE, padding=PAD)
    assert out.shape == ref.shape == (B, 64, Cout), out.shape
    assert bool(jnp.all(jnp.isfinite(out)))
    assert bool(jnp.allclose(out, ref, atol=1e-4, rtol=1e-4)), \
        float(jnp.max(jnp.abs(out - ref)))
    print("KERNEL_OK")
</pallas_src>

<mosaic_0001>
module attributes {stable_mosaic.version = 11 : i64} {
  func.func @tokenizer_block_kernel(%arg0: i32, %arg1: memref<512x27xf32, #tpu.memory_space<vmem>>, %arg2: memref<27x128xf32, #tpu.memory_space<vmem>>, %arg3: memref<64x256xf32, #tpu.memory_space<vmem>>, %arg4: memref<2x64x128xf32, #tpu.memory_space<vmem>>) attributes {dimension_semantics = [#tpu.dimension_semantics<parallel>], iteration_bounds = array<i64: 1>, scalar_prefetch = 0 : i64, scratch_operands = 0 : i64, tpu.core_type = #tpu.core_type<tc>, window_params = [{transform_indices = @transform_0, window_bounds = array<i64: 512, 27>}, {pipeline_mode = #tpu.pipeline_mode<synchronous>, transform_indices = @transform_1, window_bounds = array<i64: 27, 128>}, {pipeline_mode = #tpu.pipeline_mode<synchronous>, transform_indices = @transform_2, window_bounds = array<i64: 64, 256>}, {transform_indices = @transform_3, window_bounds = array<i64: 2, 64, 128>}]} {
    %c0 = arith.constant 0 : index
    %c0_0 = arith.constant 0 : index
    %0 = vector.load %arg1[%c0, %c0_0] : memref<512x27xf32, #tpu.memory_space<vmem>>, vector<512x27xf32>
    %c0_1 = arith.constant 0 : index
    %c0_2 = arith.constant 0 : index
    %1 = vector.load %arg2[%c0_1, %c0_2] : memref<27x128xf32, #tpu.memory_space<vmem>>, vector<27x128xf32>
    %cst = arith.constant dense<0.000000e+00> : vector<512x128xf32>
    %2 = tpu.matmul %0, %1, %cst {dimension_numbers = #tpu.dot_dimension_numbers<[1], [0], [0], [1], [0, 0, 1, 1], [], []>} : vector<512x27xf32>, vector<27x128xf32>, vector<512x128xf32> -> vector<512x128xf32>
    %3 = vector.shape_cast %2 : vector<512x128xf32> to vector<2x16x16x128xf32>
    %4 = vector.extract_strided_slice %3 {offsets = [0, 0, 0, 0], sizes = [2, 16, 1, 128], strides = [1, 1, 1, 1]} : vector<2x16x16x128xf32> to vector<2x16x1x128xf32>
    %5 = vector.extract_strided_slice %3 {offsets = [0, 0, 15, 0], sizes = [2, 16, 1, 128], strides = [1, 1, 1, 1]} : vector<2x16x16x128xf32> to vector<2x16x1x128xf32>
    %6 = tpu.concatenate %4, %3, %5 in 2 : vector<2x16x1x128xf32>, vector<2x16x16x128xf32>, vector<2x16x1x128xf32> -> vector<2x16x18x128xf32>
    %7 = vector.extract_strided_slice %6 {offsets = [0, 0, 0, 0], sizes = [2, 16, 16, 128], strides = [1, 1, 1, 1]} : vector<2x16x18x128xf32> to vector<2x16x16x128xf32>
    %8 = vector.extract_strided_slice %6 {offsets = [0, 0, 1, 0], sizes = [2, 16, 16, 128], strides = [1, 1, 1, 1]} : vector<2x16x18x128xf32> to vector<2x16x16x128xf32>
    %9 = arith.maximumf %7, %8 : vector<2x16x16x128xf32>
    %10 = vector.extract_strided_slice %6 {offsets = [0, 0, 2, 0], sizes = [2, 16, 16, 128], strides = [1, 1, 1, 1]} : vector<2x16x18x128xf32> to vector<2x16x16x128xf32>
    %11 = arith.maximumf %9, %10 : vector<2x16x16x128xf32>
    %12 = vector.extract_strided_slice %11 {offsets = [0, 0, 0, 0], sizes = [2, 1, 16, 128], strides = [1, 1, 1, 1]} : vector<2x16x16x128xf32> to vector<2x1x16x128xf32>
    %13 = vector.extract_strided_slice %11 {offsets = [0, 15, 0, 0], sizes = [2, 1, 16, 128], strides = [1, 1, 1, 1]} : vector<2x16x16x128xf32> to vector<2x1x16x128xf32>
    %14 = tpu.concatenate %12, %11, %13 in 1 : vector<2x1x16x128xf32>, vector<2x16x16x128xf32>, vector<2x1x16x128xf32> -> vector<2x18x16x128xf32>
    %15 = vector.extract_strided_slice %14 {offsets = [0, 0, 0, 0], sizes = [2, 16, 16, 128], strides = [1, 1, 1, 1]} : vector<2x18x16x128xf32> to vector<2x16x16x128xf32>
    %16 = vector.extract_strided_slice %14 {offsets = [0, 1, 0, 0], sizes = [2, 16, 16, 128], strides = [1, 1, 1, 1]} : vector<2x18x16x128xf32> to vector<2x16x16x128xf32>
    %17 = arith.maximumf %15, %16 : vector<2x16x16x128xf32>
    %18 = vector.extract_strided_slice %14 {offsets = [0, 2, 0, 0], sizes = [2, 16, 16, 128], strides = [1, 1, 1, 1]} : vector<2x18x16x128xf32> to vector<2x16x16x128xf32>
    %19 = arith.maximumf %17, %18 : vector<2x16x16x128xf32>
    %c0_3 = arith.constant 0 : index
    %c0_4 = arith.constant 0 : index
    %20 = vector.load %arg3[%c0_3, %c0_4] : memref<64x256xf32, #tpu.memory_space<vmem>>, vector<64x256xf32>
    %21 = vector.extract_strided_slice %19 {offsets = [0, 0, 0, 0], sizes = [1, 16, 16, 128], strides = [1, 1, 1, 1]} : vector<2x16x16x128xf32> to vector<1x16x16x128xf32>
    %22 = vector.shape_cast %21 : vector<1x16x16x128xf32> to vector<16x16x128xf32>
    %23 = vector.shape_cast %22 : vector<16x16x128xf32> to vector<256x128xf32>
    %cst_5 = arith.constant dense<0.000000e+00> : vector<64x128xf32>
    %24 = tpu.matmul %20, %23, %cst_5 {dimension_numbers = #tpu.dot_dimension_numbers<[1], [0], [0], [1], [0, 0, 1, 1], [], []>} : vector<64x256xf32>, vector<256x128xf32>, vector<64x128xf32> -> vector<64x128xf32>
    %c0_6 = arith.constant 0 : index
    %c0_7 = arith.constant 0 : index
    %c0_8 = arith.constant 0 : index
    %25 = vector.load %arg4[%c0_6, %c0_7, %c0_8] : memref<2x64x128xf32, #tpu.memory_space<vmem>>, vector<1x64x128xf32>
    %26 = vector.shape_cast %25 : vector<1x64x128xf32> to vector<64x128xf32>
    %27 = vector.shape_cast %24 : vector<64x128xf32> to vector<1x64x128xf32>
    tpu.vector_store %arg4[%c0_6, %c0_7, %c0_8], %27 {strides = array<i32>} : memref<2x64x128xf32, #tpu.memory_space<vmem>>, vector<1x64x128xf32>,
    %c0_9 = arith.constant 0 : index
    %c0_10 = arith.constant 0 : index
    %28 = vector.load %arg3[%c0_9, %c0_10] : memref<64x256xf32, #tpu.memory_space<vmem>>, vector<64x256xf32>
    %29 = vector.extract_strided_slice %19 {offsets = [1, 0, 0, 0], sizes = [1, 16, 16, 128], strides = [1, 1, 1, 1]} : vector<2x16x16x128xf32> to vector<1x16x16x128xf32>
    %30 = vector.shape_cast %29 : vector<1x16x16x128xf32> to vector<16x16x128xf32>
    %31 = vector.shape_cast %30 : vector<16x16x128xf32> to vector<256x128xf32>
    %cst_11 = arith.constant dense<0.000000e+00> : vector<64x128xf32>
    %32 = tpu.matmul %28, %31, %cst_11 {dimension_numbers = #tpu.dot_dimension_numbers<[1], [0], [0], [1], [0, 0, 1, 1], [], []>} : vector<64x256xf32>, vector<256x128xf32>, vector<64x128xf32> -> vector<64x128xf32>
    %c1 = arith.constant 1 : index
    %c0_12 = arith.constant 0 : index
    %c0_13 = arith.constant 0 : index
    %33 = vector.load %arg4[%c1, %c0_12, %c0_13] : memref<2x64x128xf32, #tpu.memory_space<vmem>>, vector<1x64x128xf32>
    %34 = vector.shape_cast %33 : vector<1x64x128xf32> to vector<64x128xf32>
    %35 = vector.shape_cast %32 : vector<64x128xf32> to vector<1x64x128xf32>
    tpu.vector_store %arg4[%c1, %c0_12, %c0_13], %35 {strides = array<i32>} : memref<2x64x128xf32, #tpu.memory_space<vmem>>, vector<1x64x128xf32>,
    return
  }
  func.func @transform_0(%arg0: i32) -> (i32, i32) {
    %c0_i32 = arith.constant 0 : i32
    %c0_i32_0 = arith.constant 0 : i32
    return %arg0, %c0_i32 : i32, i32
  }
  func.func @transform_1(%arg0: i32) -> (i32, i32) {
    %c0_i32 = arith.constant 0 : i32
    %c0_i32_0 = arith.constant 0 : i32
    %c0_i32_1 = arith.constant 0 : i32
    return %c0_i32, %c0_i32_0 : i32, i32
  }
  func.func @transform_2(%arg0: i32) -> (i32, i32) {
    %c0_i32 = arith.constant 0 : i32
    %c0_i32_0 = arith.constant 0 : i32
    %c0_i32_1 = arith.constant 0 : i32
    return %c0_i32, %c0_i32_0 : i32, i32
  }
  func.func @transform_3(%arg0: i32) -> (i32, i32, i32) {
    %c0_i32 = arith.constant 0 : i32
    %c0_i32_0 = arith.constant 0 : i32
    %c0_i32_1 = arith.constant 0 : i32
    return %arg0, %c0_i32, %c0_i32_0 : i32, i32, i32
  }
}

</mosaic_0001>

<llo_original>
// kernel: tpu_custom_call.1
$region0: #{tpu_custom_call.1}
  #allocation0 [shape = 'u32[]', space=smem, size = 0x4, offset = 0x4, fixed_abs, tag = 'smem constant byte address 0x4 - core index']
  #allocation1 [shape = 'u32[144,128]{1,0:T(1,128)}', space=vmem, size = 0x12000, scoped, tag = 'internal scratch']
  %s0 = inlined_call_operand.vmem [shape: f32[512,27], index: 0, kind: input, shape index: {}]
  %s1 = inlined_call_operand.vmem [shape: f32[27,128], index: 1, kind: input, shape index: {}]
  %s2 = inlined_call_operand.vmem [shape: f32[64,256], index: 2, kind: input, shape index: {}]
  %s3 = inlined_call_operand.hbm [shape: f32[2,64,128], index: 3, kind: output, shape index: {}]
  %s4 = sld [smem:[#allocation0]]
  $region22: #{tpu_custom_call.1} parent=0
    _
  %s6 = ssub.s32 1, %s4
  %s7 = scalar_select 0, %s6, %s4
  $region1: #{tpu_custom_call.1} parent=0
    #allocation2 [shape = 'u8[65536]{0}', space=vmem, size = 0x10000, scoped, tag = 'output window, operand 0, single buffered']
    #allocation3 [shape = 's32[1]{0}', space=sflag, size = 0x4, scoped, tag = 'scoped memory for tpu_custom_call.1']
    %8 = vsyncpa [#allocation3], 0
    // Predicated region
    $region2: #{tpu_custom_call.1} parent=1 // pred_check
      _
    $region3: #{tpu_custom_call.1} parent=1 // pred_check_branch
      %10 = sbr.rel (0) target = $region5
    $region4: #{tpu_custom_call.1} parent=1 // pred_region
      _
    $region5: #{tpu_custom_call.1} parent=1 // pred_fallthru
      _
    // Predicated region
    $region6: #{tpu_custom_call.1} parent=1 // pred_check
      _
    $region7: #{tpu_custom_call.1} parent=1 // pred_check_branch
      %12 = sbr.rel (0) target = $region9
    $region8: #{tpu_custom_call.1} parent=1 // pred_region
      _
    $region9: #{tpu_custom_call.1} parent=1 // pred_fallthru
      _
    // Predicated region
    $region10: #{tpu_custom_call.1} parent=1 // pred_check
      _
    $region11: #{tpu_custom_call.1} parent=1 // pred_check_branch
      %14 = sbr.rel (0) target = $region13
    $region12: #{tpu_custom_call.1} parent=1 // pred_region
      _
    $region13: #{tpu_custom_call.1} parent=1 // pred_fallthru
      _
    %v15 = vld [vmem:[%s0] sm:$0xff]
    %v16 = vld [vmem:[%s0 + $0x8] sm:$0xff]
    %v17 = vld [vmem:[%s0 + $0x10] sm:$0xff]
    %v18 = vld [vmem:[%s0 + $0x18] sm:$0xff]
    %v19 = vld [vmem:[%s0 + $0x20] sm:$0xff]
    %v20 = vld [vmem:[%s0 + $0x28] sm:$0xff]
    %v21 = vld [vmem:[%s0 + $0x30] sm:$0xff]
    %v22 = vld [vmem:[%s0 + $0x38] sm:$0xff]
    %v23 = vld [vmem:[%s0 + $0x40] sm:$0xff]
    %v24 = vld [vmem:[%s0 + $0x48] sm:$0xff]
    %v25 = vld [vmem:[%s0 + $0x50] sm:$0xff]
    %v26 = vld [vmem:[%s0 + $0x58] sm:$0xff]
    %v27 = vld [vmem:[%s0 + $0x60] sm:$0xff]
    %v28 = vld [vmem:[%s0 + $0x68] sm:$0xff]
    %v29 = vld [vmem:[%s0 + $0x70] sm:$0xff]
    %v30 = vld [vmem:[%s0 + $0x78] sm:$0xff]
    %v31 = vld [vmem:[%s0 + $0x80] sm:$0xff]
    %v32 = vld [vmem:[%s0 + $0x88] sm:$0xff]
    %v33 = vld [vmem:[%s0 + $0x90] sm:$0xff]
    %v34 = vld [vmem:[%s0 + $0x98] sm:$0xff]
    %v35 = vld [vmem:[%s0 + $0xa0] sm:$0xff]
    %v36 = vld [vmem:[%s0 + $0xa8] sm:$0xff]
    %v37 = vld [vmem:[%s0 + $0xb0] sm:$0xff]
    %v38 = vld [vmem:[%s0 + $0xb8] sm:$0xff]
    %v39 = vld [vmem:[%s0 + $0xc0] sm:$0xff]
    %v40 = vld [vmem:[%s0 + $0xc8] sm:$0xff]
    %v41 = vld [vmem:[%s0 + $0xd0] sm:$0xff]
    %v42 = vld [vmem:[%s0 + $0xd8] sm:$0xff]
    %v43 = vld [vmem:[%s0 + $0xe0] sm:$0xff]
    %v44 = vld [vmem:[%s0 + $0xe8] sm:$0xff]
    %v45 = vld [vmem:[%s0 + $0xf0] sm:$0xff]
    %v46 = vld [vmem:[%s0 + $0xf8] sm:$0xff]
    %v47 = vld [vmem:[%s0 + $0x100] sm:$0xff]
    %v48 = vld [vmem:[%s0 + $0x108] sm:$0xff]
    %v49 = vld [vmem:[%s0 + $0x110] sm:$0xff]
    %v50 = vld [vmem:[%s0 + $0x118] sm:$0xff]
    %v51 = vld [vmem:[%s0 + $0x120] sm:$0xff]
    %v52 = vld [vmem:[%s0 + $0x128] sm:$0xff]
    %v53 = vld [vmem:[%s0 + $0x130] sm:$0xff]
    %v54 = vld [vmem:[%s0 + $0x138] sm:$0xff]
    %v55 = vld [vmem:[%s0 + $0x140] sm:$0xff]
    %v56 = vld [vmem:[%s0 + $0x148] sm:$0xff]
    %v57 = vld [vmem:[%s0 + $0x150] sm:$0xff]
    %v58 = vld [vmem:[%s0 + $0x158] sm:$0xff]
    %v59 = vld [vmem:[%s0 + $0x160] sm:$0xff]
    %v60 = vld [vmem:[%s0 + $0x168] sm:$0xff]
    %v61 = vld [vmem:[%s0 + $0x170] sm:$0xff]
    %v62 = vld [vmem:[%s0 + $0x178] sm:$0xff]
    %v63 = vld [vmem:[%s0 + $0x180] sm:$0xff]
    %v64 = vld [vmem:[%s0 + $0x188] sm:$0xff]
    %v65 = vld [vmem:[%s0 + $0x190] sm:$0xff]
    %v66 = vld [vmem:[%s0 + $0x198] sm:$0xff]
    %v67 = vld [vmem:[%s0 + $0x1a0] sm:$0xff]
    %v68 = vld [vmem:[%s0 + $0x1a8] sm:$0xff]
    %v69 = vld [vmem:[%s0 + $0x1b0] sm:$0xff]
    %v70 = vld [vmem:[%s0 + $0x1b8] sm:$0xff]
    %v71 = vld [vmem:[%s0 + $0x1c0] sm:$0xff]
    %v72 = vld [vmem:[%s0 + $0x1c8] sm:$0xff]
    %v73 = vld [vmem:[%s0 + $0x1d0] sm:$0xff]
    %v74 = vld [vmem:[%s0 + $0x1d8] sm:$0xff]
    %v75 = vld [vmem:[%s0 + $0x1e0] sm:$0xff]
    %v76 = vld [vmem:[%s0 + $0x1e8] sm:$0xff]
    %v77 = vld [vmem:[%s0 + $0x1f0] sm:$0xff]
    %v78 = vld [vmem:[%s0 + $0x1f8] sm:$0xff]
    %v79 = vld [vmem:[%s1] sm:$0xff]
    %v80 = vld [vmem:[%s1 + $0x8] sm:$0xff]
    %v81 = vld [vmem:[%s1 + $0x10] sm:$0xff]
    %v82 = vld [vmem:[%s1 + $0x18] sm:$0x7]
    %vm83 = vcmask 220160
    %v85 = vsel %vm83, %v15, 0
    %v88 = vsel %vm83, %v16, 0
    %v91 = vsel %vm83, %v17, 0
    %v94 = vsel %vm83, %v18, 0
    %v97 = vsel %vm83, %v19, 0
    %v100 = vsel %vm83, %v20, 0
    %v103 = vsel %vm83, %v21, 0
    %v106 = vsel %vm83, %v22, 0
    %v109 = vsel %vm83, %v23, 0
    %v112 = vsel %vm83, %v24, 0
    %v115 = vsel %vm83, %v25, 0
    %v118 = vsel %vm83, %v26, 0
    %v121 = vsel %vm83, %v27, 0
    %v124 = vsel %vm83, %v28, 0
    %v127 = vsel %vm83, %v29, 0
    %v130 = vsel %vm83, %v30, 0
    %v133 = vsel %vm83, %v31, 0
    %v136 = vsel %vm83, %v32, 0
    %v139 = vsel %vm83, %v33, 0
    %v142 = vsel %vm83, %v34, 0
    %v145 = vsel %vm83, %v35, 0
    %v148 = vsel %vm83, %v36, 0
    %v151 = vsel %vm83, %v37, 0
    %v154 = vsel %vm83, %v38, 0
    %v157 = vsel %vm83, %v39, 0
    %v160 = vsel %vm83, %v40, 0
    %v163 = vsel %vm83, %v41, 0
    %v166 = vsel %vm83, %v42, 0
    %v169 = vsel %vm83, %v43, 0
    %v172 = vsel %vm83, %v44, 0
    %v175 = vsel %vm83, %v45, 0
    %v178 = vsel %vm83, %v46, 0
    %v181 = vsel %vm83, %v47, 0
    %v184 = vsel %vm83, %v48, 0
    %v187 = vsel %vm83, %v49, 0
    %v190 = vsel %vm83, %v50, 0
    %v193 = vsel %vm83, %v51, 0
    %v196 = vsel %vm83, %v52, 0
    %v199 = vsel %vm83, %v53, 0
    %v202 = vsel %vm83, %v54, 0
    %v205 = vsel %vm83, %v55, 0
    %v208 = vsel %vm83, %v56, 0
    %v211 = vsel %vm83, %v57, 0
    %v214 = vsel %vm83, %v58, 0
    %v217 = vsel %vm83, %v59, 0
    %v220 = vsel %vm83, %v60, 0
    %v223 = vsel %vm83, %v61, 0
    %v226 = vsel %vm83, %v62, 0
    %v229 = vsel %vm83, %v63, 0
    %v232 = vsel %vm83, %v64, 0
    %v235 = vsel %vm83, %v65, 0
    %v238 = vsel %vm83, %v66, 0
    %v241 = vsel %vm83, %v67, 0
    %v244 = vsel %vm83, %v68, 0
    %v247 = vsel %vm83, %v69, 0
    %v250 = vsel %vm83, %v70, 0
    %v253 = vsel %vm83, %v71, 0
    %v256 = vsel %vm83, %v72, 0
    %v259 = vsel %vm83, %v73, 0
    %v262 = vsel %vm83, %v74, 0
    %v265 = vsel %vm83, %v75, 0
    %v268 = vsel %vm83, %v76, 0
    %v271 = vsel %vm83, %v77, 0
    %v274 = vsel %vm83, %v78, 0
    %vm276 = vcmask 1042432
    %v278 = vsel %vm276, %v82, 0
    %280 = vmatprep.subr.mxu0 0.0
    %281 = vmatpush1.msra.mxu0 %v79
    %282 = vmatprep.subr.mxu0 0.0
    %283 = vmatpush1.msra.mxu0 %v80
    %284 = vmatprep.subr.mxu0 0.0
    %285 = vmatpush1.msra.mxu0 %v81
    %286 = vmatprep.subr.mxu0 0.0
    %287 = vmatpush1.msra.mxu0 %v278
    %288 = vmatprep.subr.mxu0 0.0
    %289 = vmatpush1.msra.mxu0 0.0
    %290 = vmatprep.subr.mxu0 0.0
    %291 = vmatpush1.msra.mxu0 0.0
    %292 = vmatprep.subr.mxu0 0.0
    %293 = vmatpush1.msra.mxu0 0.0
    %294 = vmatprep.subr.mxu0 0.0
    %295 = vmatpush1.msra.mxu0 0.0
    %296 = vmatprep.subr.mxu0 0.0
    %297 = vmatpush1.msra.mxu0 0.0
    %298 = vmatprep.subr.mxu0 0.0
    %299 = vmatpush1.msra.mxu0 0.0
    %300 = vmatprep.subr.mxu0 0.0
    %301 = vmatpush1.msra.mxu0 0.0
    %302 = vmatprep.subr.mxu0 0.0
    %303 = vmatpush1.msra.mxu0 0.0
    %304 = vmatprep.subr.mxu0 0.0
    %305 = vmatpush1.msra.mxu0 0.0
    %306 = vmatprep.subr.mxu0 0.0
    %307 = vmatpush1.msra.mxu0 0.0
    %308 = vmatprep.subr.mxu0 0.0
    %309 = vmatpush1.msra.mxu0 0.0
    %310 = vmatprep.subr.mxu0 0.0
    %311 = vmatpush1.msra.mxu0 0.0
    %312 = vmatprep.subr.mxu0 0.0
    %313 = vmatpush1.msra.mxu0 0.0
    %314 = vmatprep.subr.mxu0 0.0
    %315 = vmatpush1.msra.mxu0 0.0
    %316 = vmatprep.subr.mxu0 0.0
    %317 = vmatpush1.msra.mxu0 0.0
    %318 = vmatprep.subr.mxu0 0.0
    %319 = vmatpush1.msra.mxu0 0.0
    %320 = vmatprep.subr.mxu0 0.0
    %321 = vmatpush1.msra.mxu0 0.0
    %322 = vmatprep.subr.mxu0 0.0
    %323 = vmatpush1.msra.mxu0 0.0
    %324 = vmatprep.subr.mxu0 0.0
    %325 = vmatpush1.msra.mxu0 0.0
    %326 = vmatprep.subr.mxu0 0.0
    %327 = vmatpush1.msra.mxu0 0.0
    %328 = vmatprep.subr.mxu0 0.0
    %329 = vmatpush1.msra.mxu0 0.0
    %330 = vmatprep.subr.mxu0 0.0
    %331 = vmatpush1.msra.mxu0 0.0
    %332 = vmatprep.subr.mxu0 0.0
    %333 = vmatpush1.msra.mxu0 0.0
    %334 = vmatprep.subr.mxu0 0.0
    %335 = vmatpush1.msra.mxu0 0.0
    %336 = vmatprep.subr.mxu0 0.0
    %337 = vmatpush1.msra.mxu0 0.0
    %338 = vmatprep.subr.mxu0 0.0
    %339 = vmatpush1.msra.mxu0 0.0
    %340 = vmatprep.subr.mxu0 0.0
    %341 = vmatpush1.msra.mxu0 0.0
    %342 = vmatprep.subr.mxu0 0.0
    %343 = vmatpush1.msra.mxu0 0.0
    %344 = vmatprep.mubr.f32.mxu0 0.0
    %345 = vmatmul.mubr.f32.gmra.mrb[0].mxu0 %v85
    %v346 = vpop.f32.mrb[0].mxu0
    %v347 = vadd.f32 0.0, %v346
    %v348 = vpop.f32.mrb[0].mxu0
    %349 = vmatprep.mubr.f32.mxu0 0.0
    %350 = vmatmul.mubr.f32.gmra.mrb[0].mxu0 %v88
    %v351 = vpop.f32.mrb[0].mxu0
    %v352 = vadd.f32 0.0, %v351
    %v353 = vpop.f32.mrb[0].mxu0
    %354 = vmatprep.mubr.f32.mxu0 0.0
    %355 = vmatmul.mubr.f32.gmra.mrb[0].mxu0 %v91
    %v356 = vpop.f32.mrb[0].mxu0
    %v357 = vadd.f32 0.0, %v356
    %v358 = vpop.f32.mrb[0].mxu0
    %359 = vmatprep.mubr.f32.mxu0 0.0
    %360 = vmatmul.mubr.f32.gmra.mrb[0].mxu0 %v94
    %v361 = vpop.f32.mrb[0].mxu0
    %v362 = vadd.f32 0.0, %v361
    %v363 = vpop.f32.mrb[0].mxu0
    %364 = vmatprep.mubr.f32.mxu0 0.0
    %365 = vmatmul.mubr.f32.gmra.mrb[0].mxu0 %v97
    %v366 = vpop.f32.mrb[0].mxu0
    %v367 = vadd.f32 0.0, %v366
    %v368 = vpop.f32.mrb[0].mxu0
    %369 = vmatprep.mubr.f32.mxu0 0.0
    %370 = vmatmul.mubr.f32.gmra.mrb[0].mxu0 %v100
    %v371 = vpop.f32.mrb[0].mxu0
    %v372 = vadd.f32 0.0, %v371
    %v373 = vpop.f32.mrb[0].mxu0
    %374 = vmatprep.mubr.f32.mxu0 0.0
    %375 = vmatmul.mubr.f32.gmra.mrb[0].mxu0 %v103
    %v376 = vpop.f32.mrb[0].mxu0
    %v377 = vadd.f32 0.0, %v376
    %v378 = vpop.f32.mrb[0].mxu0
    %379 = vmatprep.mubr.f32.mxu0 0.0
    %380 = vmatmul.mubr.f32.gmra.mrb[0].mxu0 %v106
    %v381 = vpop.f32.mrb[0].mxu0
    %v382 = vadd.f32 0.0, %v381
    %v383 = vpop.f32.mrb[0].mxu0
    %384 = vmatprep.mubr.f32.mxu0 0.0
    %385 = vmatmul.mubr.f32.gmra.mrb[0].mxu0 %v109
    %v386 = vpop.f32.mrb[0].mxu0
    %v387 = vadd.f32 0.0, %v386
    %v388 = vpop.f32.mrb[0].mxu0
    %389 = vmatprep.mubr.f32.mxu0 0.0
    %390 = vmatmul.mubr.f32.gmra.mrb[0].mxu0 %v112
    %v391 = vpop.f32.mrb[0].mxu0
    %v392 = vadd.f32 0.0, %v391
    %v393 = vpop.f32.mrb[0].mxu0
    %394 = vmatprep.mubr.f32.mxu0 0.0
    %395 = vmatmul.mubr.f32.gmra.mrb[0].mxu0 %v115
    %v396 = vpop.f32.mrb[0].mxu0
    %v397 = vadd.f32 0.0, %v396
    %v398 = vpop.f32.mrb[0].mxu0
    %399 = vmatprep.mubr.f32.mxu0 0.0
    %400 = vmatmul.mubr.f32.gmra.mrb[0].mxu0 %v118
    %v401 = vpop.f32.mrb[0].mxu0
    %v402 = vadd.f32 0.0, %v401
    %v403 = vpop.f32.mrb[0].mxu0
    %404 = vmatprep.mubr.f32.mxu0 0.0
    %405 = vmatmul.mubr.f32.gmra.mrb[0].mxu0 %v121
    %v406 = vpop.f32.mrb[0].mxu0
    %v407 = vadd.f32 0.0, %v406
    %v408 = vpop.f32.mrb[0].mxu0
    %409 = vmatprep.mubr.f32.mxu0 0.0
    %410 = vmatmul.mubr.f32.gmra.mrb[0].mxu0 %v124
    %v411 = vpop.f32.mrb[0].mxu0
    %v412 = vadd.f32 0.0, %v411
    %v413 = vpop.f32.mrb[0].mxu0
    %414 = vmatprep.mubr.f32.mxu0 0.0
    %415 = vmatmul.mubr.f32.gmra.mrb[0].mxu0 %v127
    %v416 = vpop.f32.mrb[0].mxu0
    %v417 = vadd.f32 0.0, %v416
    %v418 = vpop.f32.mrb[0].mxu0
    %419 = vmatprep.mubr.f32.mxu0 0.0
    %420 = vmatmul.mubr.f32.gmra.mrb[0].mxu0 %v130
    %v421 = vpop.f32.mrb[0].mxu0
    %v422 = vadd.f32 0.0, %v421
    %v423 = vpop.f32.mrb[0].mxu0
    %424 = vmatprep.mubr.f32.mxu0 0.0
    %425 = vmatmul.mubr.f32.gmra.mrb[0].mxu0 %v133
    %v426 = vpop.f32.mrb[0].mxu0
    %v427 = vadd.f32 0.0, %v426
    %v428 = vpop.f32.mrb[0].mxu0
    %429 = vmatprep.mubr.f32.mxu0 0.0
    %430 = vmatmul.mubr.f32.gmra.mrb[0].mxu0 %v136
    %v431 = vpop.f32.mrb[0].mxu0
    %v432 = vadd.f32 0.0, %v431
    %v433 = vpop.f32.mrb[0].mxu0
    %434 = vmatprep.mubr.f32.mxu0 0.0
    %435 = vmatmul.mubr.f32.gmra.mrb[0].mxu0 %v139
    %v436 = vpop.f32.mrb[0].mxu0
    %v437 = vadd.f32 0.0, %v436
    %v438 = vpop.f32.mrb[0].mxu0
    %439 = vmatprep.mubr.f32.mxu0 0.0
    %440 = vmatmul.mubr.f32.gmra.mrb[0].mxu0 %v142
    %v441 = vpop.f32.mrb[0].mxu0
    %v442 = vadd.f32 0.0, %v441
    %v443 = vpop.f32.mrb[0].mxu0
    %444 = vmatprep.mubr.f32.mxu0 0.0
    %445 = vmatmul.mubr.f32.gmra.mrb[0].mxu0 %v145
    %v446 = vpop.f32.mrb[0].mxu0
    %v447 = vadd.f32 0.0, %v446
    %v448 = vpop.f32.mrb[0].mxu0
    %449 = vmatprep.mubr.f32.mxu0 0.0
    %450 = vmatmul.mubr.f32.gmra.mrb[0].mxu0 %v148
    %v451 = vpop.f32.mrb[0].mxu0
    %v452 = vadd.f32 0.0, %v451
    %v453 = vpop.f32.mrb[0].mxu0
    %454 = vmatprep.mubr.f32.mxu0 0.0
    %455 = vmatmul.mubr.f32.gmra.mrb[0].mxu0 %v151
    %v456 = vpop.f32.mrb[0].mxu0
    %v457 = vadd.f32 0.0, %v456
    %v458 = vpop.f32.mrb[0].mxu0
    %459 = vmatprep.mubr.f32.mxu0 0.0
    %460 = vmatmul.mubr.f32.gmra.mrb[0].mxu0 %v154
    %v461 = vpop.f32.mrb[0].mxu0
    %v462 = vadd.f32 0.0, %v461
    %v463 = vpop.f32.mrb[0].mxu0
    %464 = vmatprep.mubr.f32.mxu0 0.0
    %465 = vmatmul.mubr.f32.gmra.mrb[0].mxu0 %v157
    %v466 = vpop.f32.mrb[0].mxu0
    %v467 = vadd.f32 0.0, %v466
    %v468 = vpop.f32.mrb[0].mxu0
    %469 = vmatprep.mubr.f32.mxu0 0.0
    %470 = vmatmul.mubr.f32.gmra.mrb[0].mxu0 %v160
    %v471 = vpop.f32.mrb[0].mxu0
    %v472 = vadd.f32 0.0, %v471
    %v473 = vpop.f32.mrb[0].mxu0
    %474 = vmatprep.mubr.f32.mxu0 0.0
    %475 = vmatmul.mubr.f32.gmra.mrb[0].mxu0 %v163
    %v476 = vpop.f32.mrb[0].mxu0
    %v477 = vadd.f32 0.0, %v476
    %v478 = vpop.f32.mrb[0].mxu0
    %479 = vmatprep.mubr.f32.mxu0 0.0
    %480 = vmatmul.mubr.f32.gmra.mrb[0].mxu0 %v166
    %v481 = vpop.f32.mrb[0].mxu0
    %v482 = vadd.f32 0.0, %v481
    %v483 = vpop.f32.mrb[0].mxu0
    %484 = vmatprep.mubr.f32.mxu0 0.0
    %485 = vmatmul.mubr.f32.gmra.mrb[0].mxu0 %v169
    %v486 = vpop.f32.mrb[0].mxu0
    %v487 = vadd.f32 0.0, %v486
    %v488 = vpop.f32.mrb[0].mxu0
    %489 = vmatprep.mubr.f32.mxu0 0.0
    %490 = vmatmul.mubr.f32.gmra.mrb[0].mxu0 %v172
    %v491 = vpop.f32.mrb[0].mxu0
    %v492 = vadd.f32 0.0, %v491
    %v493 = vpop.f32.mrb[0].mxu0
    %494 = vmatprep.mubr.f32.mxu0 0.0
    %495 = vmatmul.mubr.f32.gmra.mrb[0].mxu0 %v175
    %v496 = vpop.f32.mrb[0].mxu0
    %v497 = vadd.f32 0.0, %v496
    %v498 = vpop.f32.mrb[0].mxu0
    %499 = vmatprep.mubr.f32.mxu0 0.0
    %500 = vmatmul.mubr.f32.gmra.mrb[0].mxu0 %v178
    %v501 = vpop.f32.mrb[0].mxu0
    %v502 = vadd.f32 0.0, %v501
    %v503 = vpop.f32.mrb[0].mxu0
    %504 = vmatprep.mubr.f32.mxu0 0.0
    %505 = vmatmul.mubr.f32.gmra.mrb[0].mxu0 %v181
    %v506 = vpop.f32.mrb[0].mxu0
    %v507 = vadd.f32 0.0, %v506
    %v508 = vpop.f32.mrb[0].mxu0
    %509 = vmatprep.mubr.f32.mxu0 0.0
    %510 = vmatmul.mubr.f32.gmra.mrb[0].mxu0 %v184
    %v511 = vpop.f32.mrb[0].mxu0
    %v512 = vadd.f32 0.0, %v511
    %v513 = vpop.f32.mrb[0].mxu0
    %514 = vmatprep.mubr.f32.mxu0 0.0
    %515 = vmatmul.mubr.f32.gmra.mrb[0].mxu0 %v187
    %v516 = vpop.f32.mrb[0].mxu0
    %v517 = vadd.f32 0.0, %v516
    %v518 = vpop.f32.mrb[0].mxu0
    %519 = vmatprep.mubr.f32.mxu0 0.0
    %520 = vmatmul.mubr.f32.gmra.mrb[0].mxu0 %v190
    %v521 = vpop.f32.mrb[0].mxu0
    %v522 = vadd.f32 0.0, %v521
    %v523 = vpop.f32.mrb[0].mxu0
    %524 = vmatprep.mubr.f32.mxu0 0.0
    %525 = vmatmul.mubr.f32.gmra.mrb[0].mxu0 %v193
    %v526 = vpop.f32.mrb[0].mxu0
    %v527 = vadd.f32 0.0, %v526
    %v528 = vpop.f32.mrb[0].mxu0
    %529 = vmatprep.mubr.f32.mxu0 0.0
    %530 = vmatmul.mubr.f32.gmra.mrb[0].mxu0 %v196
    %v531 = vpop.f32.mrb[0].mxu0
    %v532 = vadd.f32 0.0, %v531
    %v533 = vpop.f32.mrb[0].mxu0
    %534 = vmatprep.mubr.f32.mxu0 0.0
    %535 = vmatmul.mubr.f32.gmra.mrb[0].mxu0 %v199
    %v536 = vpop.f32.mrb[0].mxu0
    %v537 = vadd.f32 0.0, %v536
    %v538 = vpop.f32.mrb[0].mxu0
    %539 = vmatprep.mubr.f32.mxu0 0.0
    %540 = vmatmul.mubr.f32.gmra.mrb[0].mxu0 %v202
    %v541 = vpop.f32.mrb[0].mxu0
    %v542 = vadd.f32 0.0, %v541
    %v543 = vpop.f32.mrb[0].mxu0
    %544 = vmatprep.mubr.f32.mxu0 0.0
    %545 = vmatmul.mubr.f32.gmra.mrb[0].mxu0 %v205
    %v546 = vpop.f32.mrb[0].mxu0
    %v547 = vadd.f32 0.0, %v546
    %v548 = vpop.f32.mrb[0].mxu0
    %549 = vmatprep.mubr.f32.mxu0 0.0
    %550 = vmatmul.mubr.f32.gmra.mrb[0].mxu0 %v208
    %v551 = vpop.f32.mrb[0].mxu0
    %v552 = vadd.f32 0.0, %v551
    %v553 = vpop.f32.mrb[0].mxu0
    %554 = vmatprep.mubr.f32.mxu0 0.0
    %555 = vmatmul.mubr.f32.gmra.mrb[0].mxu0 %v211
    %v556 = vpop.f32.mrb[0].mxu0
    %v557 = vadd.f32 0.0, %v556
    %v558 = vpop.f32.mrb[0].mxu0
    %559 = vmatprep.mubr.f32.mxu0 0.0
    %560 = vmatmul.mubr.f32.gmra.mrb[0].mxu0 %v214
    %v561 = vpop.f32.mrb[0].mxu0
    %v562 = vadd.f32 0.0, %v561
    %v563 = vpop.f32.mrb[0].mxu0
    %564 = vmatprep.mubr.f32.mxu0 0.0
    %565 = vmatmul.mubr.f32.gmra.mrb[0].mxu0 %v217
    %v566 = vpop.f32.mrb[0].mxu0
    %v567 = vadd.f32 0.0, %v566
    %v568 = vpop.f32.mrb[0].mxu0
    %569 = vmatprep.mubr.f32.mxu0 0.0
    %570 = vmatmul.mubr.f32.gmra.mrb[0].mxu0 %v220
    %v571 = vpop.f32.mrb[0].mxu0
    %v572 = vadd.f32 0.0, %v571
    %v573 = vpop.f32.mrb[0].mxu0
    %574 = vmatprep.mubr.f32.mxu0 0.0
    %575 = vmatmul.mubr.f32.gmra.mrb[0].mxu0 %v223
    %v576 = vpop.f32.mrb[0].mxu0
    %v577 = vadd.f32 0.0, %v576
    %v578 = vpop.f32.mrb[0].mxu0
    %579 = vmatprep.mubr.f32.mxu0 0.0
    %580 = vmatmul.mubr.f32.gmra.mrb[0].mxu0 %v226
    %v581 = vpop.f32.mrb[0].mxu0
    %v582 = vadd.f32 0.0, %v581
    %v583 = vpop.f32.mrb[0].mxu0
    %584 = vmatprep.mubr.f32.mxu0 0.0
    %585 = vmatmul.mubr.f32.gmra.mrb[0].mxu0 %v229
    %v586 = vpop.f32.mrb[0].mxu0
    %v587 = vadd.f32 0.0, %v586
    %v588 = vpop.f32.mrb[0].mxu0
    %589 = vmatprep.mubr.f32.mxu0 0.0
    %590 = vmatmul.mubr.f32.gmra.mrb[0].mxu0 %v232
    %v591 = vpop.f32.mrb[0].mxu0
    %v592 = vadd.f32 0.0, %v591
    %v593 = vpop.f32.mrb[0].mxu0
    %594 = vmatprep.mubr.f32.mxu0 0.0
    %595 = vmatmul.mubr.f32.gmra.mrb[0].mxu0 %v235
    %v596 = vpop.f32.mrb[0].mxu0
    %v597 = vadd.f32 0.0, %v596
    %v598 = vpop.f32.mrb[0].mxu0
    %599 = vmatprep.mubr.f32.mxu0 0.0
    %600 = vmatmul.mubr.f32.gmra.mrb[0].mxu0 %v238
    %v601 = vpop.f32.mrb[0].mxu0
    %v602 = vadd.f32 0.0, %v601
    %v603 = vpop.f32.mrb[0].mxu0
    %604 = vmatprep.mubr.f32.mxu0 0.0
    %605 = vmatmul.mubr.f32.gmra.mrb[0].mxu0 %v241
    %v606 = vpop.f32.mrb[0].mxu0
    %v607 = vadd.f32 0.0, %v606
    %v608 = vpop.f32.mrb[0].mxu0
    %609 = vmatprep.mubr.f32.mxu0 0.0
    %610 = vmatmul.mubr.f32.gmra.mrb[0].mxu0 %v244
    %v611 = vpop.f32.mrb[0].mxu0
    %v612 = vadd.f32 0.0, %v611
    %v613 = vpop.f32.mrb[0].mxu0
    %614 = vmatprep.mubr.f32.mxu0 0.0
    %615 = vmatmul.mubr.f32.gmra.mrb[0].mxu0 %v247
    %v616 = vpop.f32.mrb[0].mxu0
    %v617 = vadd.f32 0.0, %v616
    %v618 = vpop.f32.mrb[0].mxu0
    %619 = vmatprep.mubr.f32.mxu0 0.0
    %620 = vmatmul.mubr.f32.gmra.mrb[0].mxu0 %v250
    %v621 = vpop.f32.mrb[0].mxu0
    %v622 = vadd.f32 0.0, %v621
    %v623 = vpop.f32.mrb[0].mxu0
    %624 = vmatprep.mubr.f32.mxu0 0.0
    %625 = vmatmul.mubr.f32.gmra.mrb[0].mxu0 %v253
    %v626 = vpop.f32.mrb[0].mxu0
    %v627 = vadd.f32 0.0, %v626
    %v628 = vpop.f32.mrb[0].mxu0
    %629 = vmatprep.mubr.f32.mxu0 0.0
    %630 = vmatmul.mubr.f32.gmra.mrb[0].mxu0 %v256
    %v631 = vpop.f32.mrb[0].mxu0
    %v632 = vadd.f32 0.0, %v631
    %v633 = vpop.f32.mrb[0].mxu0
    %634 = vmatprep.mubr.f32.mxu0 0.0
    %635 = vmatmul.mubr.f32.gmra.mrb[0].mxu0 %v259
    %v636 = vpop.f32.mrb[0].mxu0
    %v637 = vadd.f32 0.0, %v636
    %v638 = vpop.f32.mrb[0].mxu0
    %639 = vmatprep.mubr.f32.mxu0 0.0
    %640 = vmatmul.mubr.f32.gmra.mrb[0].mxu0 %v262
    %v641 = vpop.f32.mrb[0].mxu0
    %v642 = vadd.f32 0.0, %v641
    %v643 = vpop.f32.mrb[0].mxu0
    %644 = vmatprep.mubr.f32.mxu0 0.0
    %645 = vmatmul.mubr.f32.gmra.mrb[0].mxu0 %v265
    %v646 = vpop.f32.mrb[0].mxu0
    %v647 = vadd.f32 0.0, %v646
    %v648 = vpop.f32.mrb[0].mxu0
    %649 = vmatprep.mubr.f32.mxu0 0.0
    %650 = vmatmul.mubr.f32.gmra.mrb[0].mxu0 %v268
    %v651 = vpop.f32.mrb[0].mxu0
    %v652 = vadd.f32 0.0, %v651
    %v653 = vpop.f32.mrb[0].mxu0
    %654 = vmatprep.mubr.f32.mxu0 0.0
    %655 = vmatmul.mubr.f32.gmra.mrb[0].mxu0 %v271
    %v656 = vpop.f32.mrb[0].mxu0
    %v657 = vadd.f32 0.0, %v656
    %v658 = vpop.f32.mrb[0].mxu0
    %659 = vmatprep.mubr.f32.mxu0 0.0
    %660 = vmatmul.mubr.f32.gmra.mrb[0].mxu0 %v274
    %v661 = vpop.f32.mrb[0].mxu0
    %v662 = vadd.f32 0.0, %v661
    %v663 = vpop.f32.mrb[0].mxu0
    %664 = vdwg.mxu0
    %vm729 = vcmask 1040384
    %v730 = vrot.slane %v347, 7
    %v731 = vrot.slane %v352, 7
    %v732 = vsel %vm729, %v730, %v731
    %v733 = vrot.slane %v357, 7
    %v734 = vrot.slane %v362, 7
    %v735 = vsel %vm729, %v733, %v734
    %v736 = vrot.slane %v367, 7
    %v737 = vrot.slane %v372, 7
    %v738 = vsel %vm729, %v736, %v737
    %v739 = vrot.slane %v377, 7
    %v740 = vrot.slane %v382, 7
    %v741 = vsel %vm729, %v739, %v740
    %v742 = vrot.slane %v387, 7
    %v743 = vrot.slane %v392, 7
    %v744 = vsel %vm729, %v742, %v743
    %v745 = vrot.slane %v397, 7
    %v746 = vrot.slane %v402, 7
    %v747 = vsel %vm729, %v745, %v746
    %v748 = vrot.slane %v407, 7
    %v749 = vrot.slane %v412, 7
    %v750 = vsel %vm729, %v748, %v749
    %v751 = vrot.slane %v417, 7
    %v752 = vrot.slane %v422, 7
    %v753 = vsel %vm729, %v751, %v752
    %v754 = vrot.slane %v427, 7
    %v755 = vrot.slane %v432, 7
    %v756 = vsel %vm729, %v754, %v755
    %v757 = vrot.slane %v437, 7
    %v758 = vrot.slane %v442, 7
    %v759 = vsel %vm729, %v757, %v758
    %v760 = vrot.slane %v447, 7
    %v761 = vrot.slane %v452, 7
    %v762 = vsel %vm729, %v760, %v761
    %v763 = vrot.slane %v457, 7
    %v764 = vrot.slane %v462, 7
    %v765 = vsel %vm729, %v763, %v764
    %v766 = vrot.slane %v467, 7
    %v767 = vrot.slane %v472, 7
    %v768 = vsel %vm729, %v766, %v767
    %v769 = vrot.slane %v477, 7
    %v770 = vrot.slane %v482, 7
    %v771 = vsel %vm729, %v769, %v770
    %v772 = vrot.slane %v487, 7
    %v773 = vrot.slane %v492, 7
    %v774 = vsel %vm729, %v772, %v773
    %v775 = vrot.slane %v497, 7
    %v776 = vrot.slane %v502, 7
    %v777 = vsel %vm729, %v775, %v776
    %v778 = vrot.slane %v507, 7
    %v779 = vrot.slane %v512, 7
    %v780 = vsel %vm729, %v778, %v779
    %v781 = vrot.slane %v517, 7
    %v782 = vrot.slane %v522, 7
    %v783 = vsel %vm729, %v781, %v782
    %v784 = vrot.slane %v527, 7
    %v785 = vrot.slane %v532, 7
    %v786 = vsel %vm729, %v784, %v785
    %v787 = vrot.slane %v537, 7
    %v788 = vrot.slane %v542, 7
    %v789 = vsel %vm729, %v787, %v788
    %v790 = vrot.slane %v547, 7
    %v791 = vrot.slane %v552, 7
    %v792 = vsel %vm729, %v790, %v791
    %v793 = vrot.slane %v557, 7
    %v794 = vrot.slane %v562, 7
    %v795 = vsel %vm729, %v793, %v794
    %v796 = vrot.slane %v567, 7
    %v797 = vrot.slane %v572, 7
    %v798 = vsel %vm729, %v796, %v797
    %v799 = vrot.slane %v577, 7
    %v800 = vrot.slane %v582, 7
    %v801 = vsel %vm729, %v799, %v800
    %v802 = vrot.slane %v587, 7
    %v803 = vrot.slane %v592, 7
    %v804 = vsel %vm729, %v802, %v803
    %v805 = vrot.slane %v597, 7
    %v806 = vrot.slane %v602, 7
    %v807 = vsel %vm729, %v805, %v806
    %v808 = vrot.slane %v607, 7
    %v809 = vrot.slane %v612, 7
    %v810 = vsel %vm729, %v808, %v809
    %v811 = vrot.slane %v617, 7
    %v812 = vrot.slane %v622, 7
    %v813 = vsel %vm729, %v811, %v812
    %v814 = vrot.slane %v627, 7
    %v815 = vrot.slane %v632, 7
    %v816 = vsel %vm729, %v814, %v815
    %v817 = vrot.slane %v637, 7
    %v818 = vrot.slane %v642, 7
    %v819 = vsel %vm729, %v817, %v818
    %v820 = vrot.slane %v647, 7
    %v821 = vrot.slane %v652, 7
    %v822 = vsel %vm729, %v820, %v821
    %v823 = vrot.slane %v657, 7
    %v824 = vrot.slane %v662, 7
    %v825 = vsel %vm729, %v823, %v824
    %v922 = vrot.slane %v352, 6
    %v923 = vrot.slane %v362, 6
    %v924 = vrot.slane %v372, 6
    %v925 = vrot.slane %v382, 6
    %v926 = vrot.slane %v392, 6
    %v927 = vrot.slane %v402, 6
    %v928 = vrot.slane %v412, 6
    %v929 = vrot.slane %v422, 6
    %v930 = vrot.slane %v432, 6
    %v931 = vrot.slane %v442, 6
    %v932 = vrot.slane %v452, 6
    %v933 = vrot.slane %v462, 6
    %v934 = vrot.slane %v472, 6
    %v935 = vrot.slane %v482, 6
    %v936 = vrot.slane %v492, 6
    %v937 = vrot.slane %v502, 6
    %v938 = vrot.slane %v512, 6
    %v939 = vrot.slane %v522, 6
    %v940 = vrot.slane %v532, 6
    %v941 = vrot.slane %v542, 6
    %v942 = vrot.slane %v552, 6
    %v943 = vrot.slane %v562, 6
    %v944 = vrot.slane %v572, 6
    %v945 = vrot.slane %v582, 6
    %v946 = vrot.slane %v592, 6
    %v947 = vrot.slane %v602, 6
    %v948 = vrot.slane %v612, 6
    %v949 = vrot.slane %v622, 6
    %v950 = vrot.slane %v632, 6
    %v951 = vrot.slane %v642, 6
    %v952 = vrot.slane %v652, 6
    %v953 = vrot.slane %v662, 6
    %v986 = vsel %vm729, %v347, %v730
    %v987 = vsel %vm729, %v357, %v733
    %v988 = vsel %vm729, %v367, %v736
    %v989 = vsel %vm729, %v377, %v739
    %v990 = vsel %vm729, %v387, %v742
    %v991 = vsel %vm729, %v397, %v745
    %v992 = vsel %vm729, %v407, %v748
    %v993 = vsel %vm729, %v417, %v751
    %v994 = vsel %vm729, %v427, %v754
    %v995 = vsel %vm729, %v437, %v757
    %v996 = vsel %vm729, %v447, %v760
    %v997 = vsel %vm729, %v457, %v763
    %v998 = vsel %vm729, %v467, %v766
    %v999 = vsel %vm729, %v477, %v769
    %v1000 = vsel %vm729, %v487, %v772
    %v1001 = vsel %vm729, %v497, %v775
    %v1002 = vsel %vm729, %v507, %v778
    %v1003 = vsel %vm729, %v517, %v781
    %v1004 = vsel %vm729, %v527, %v784
    %v1005 = vsel %vm729, %v537, %v787
    %v1006 = vsel %vm729, %v547, %v790
    %v1007 = vsel %vm729, %v557, %v793
    %v1008 = vsel %vm729, %v567, %v796
    %v1009 = vsel %vm729, %v577, %v799
    %v1010 = vsel %vm729, %v587, %v802
    %v1011 = vsel %vm729, %v597, %v805
    %v1012 = vsel %vm729, %v607, %v808
    %v1013 = vsel %vm729, %v617, %v811
    %v1014 = vsel %vm729, %v627, %v814
    %v1015 = vsel %vm729, %v637, %v817
    %v1016 = vsel %vm729, %v647, %v820
    %v1017 = vsel %vm729, %v657, %v823
    %v1018 = vsel %vm729, %v731, %v922
    %v1019 = vsel %vm729, %v734, %v923
    %v1020 = vsel %vm729, %v737, %v924
    %v1021 = vsel %vm729, %v740, %v925
    %v1022 = vsel %vm729, %v743, %v926
    %v1023 = vsel %vm729, %v746, %v927
    %v1024 = vsel %vm729, %v749, %v928
    %v1025 = vsel %vm729, %v752, %v929
    %v1026 = vsel %vm729, %v755, %v930
    %v1027 = vsel %vm729, %v758, %v931
    %v1028 = vsel %vm729, %v761, %v932
    %v1029 = vsel %vm729, %v764, %v933
    %v1030 = vsel %vm729, %v767, %v934
    %v1031 = vsel %vm729, %v770, %v935
    %v1032 = vsel %vm729, %v773, %v936
    %v1033 = vsel %vm729, %v776, %v937
    %v1034 = vsel %vm729, %v779, %v938
    %v1035 = vsel %vm729, %v782, %v939
    %v1036 = vsel %vm729, %v785, %v940
    %v1037 = vsel %vm729, %v788, %v941
    %v1038 = vsel %vm729, %v791, %v942
    %v1039 = vsel %vm729, %v794, %v943
    %v1040 = vsel %vm729, %v797, %v944
    %v1041 = vsel %vm729, %v800, %v945
    %v1042 = vsel %vm729, %v803, %v946
    %v1043 = vsel %vm729, %v806, %v947
    %v1044 = vsel %vm729, %v809, %v948
    %v1045 = vsel %vm729, %v812, %v949
    %v1046 = vsel %vm729, %v815, %v950
    %v1047 = vsel %vm729, %v818, %v951
    %v1048 = vsel %vm729, %v821, %v952
    %v1049 = vsel %vm729, %v824, %v953
    %vm1114 = vcmask 1046528
    %v1115 = vrot.slane %v986, 1
    %v1116 = vrot.slane %v732, 1
    %v1117 = vsel %vm1114, %v1115, %v1116
    %v1118 = vrot.slane %v1018, 1
    %v1119 = vsel %vm1114, %v1116, %v1118
    %v1120 = vrot.slane %v987, 1
    %v1121 = vrot.slane %v735, 1
    %v1122 = vsel %vm1114, %v1120, %v1121
    %v1123 = vrot.slane %v1019, 1
    %v1124 = vsel %vm1114, %v1121, %v1123
    %v1125 = vrot.slane %v988, 1
    %v1126 = vrot.slane %v738, 1
    %v1127 = vsel %vm1114, %v1125, %v1126
    %v1128 = vrot.slane %v1020, 1
    %v1129 = vsel %vm1114, %v1126, %v1128
    %v1130 = vrot.slane %v989, 1
    %v1131 = vrot.slane %v741, 1
    %v1132 = vsel %vm1114, %v1130, %v1131
    %v1133 = vrot.slane %v1021, 1
    %v1134 = vsel %vm1114, %v1131, %v1133
    %v1135 = vrot.slane %v990, 1
    %v1136 = vrot.slane %v744, 1
    %v1137 = vsel %vm1114, %v1135, %v1136
    %v1138 = vrot.slane %v1022, 1
    %v1139 = vsel %vm1114, %v1136, %v1138
    %v1140 = vrot.slane %v991, 1
    %v1141 = vrot.slane %v747, 1
    %v1142 = vsel %vm1114, %v1140, %v1141
    %v1143 = vrot.slane %v1023, 1
    %v1144 = vsel %vm1114, %v1141, %v1143
    %v1145 = vrot.slane %v992, 1
    %v1146 = vrot.slane %v750, 1
    %v1147 = vsel %vm1114, %v1145, %v1146
    %v1148 = vrot.slane %v1024, 1
    %v1149 = vsel %vm1114, %v1146, %v1148
    %v1150 = vrot.slane %v993, 1
    %v1151 = vrot.slane %v753, 1
    %v1152 = vsel %vm1114, %v1150, %v1151
    %v1153 = vrot.slane %v1025, 1
    %v1154 = vsel %vm1114, %v1151, %v1153
    %v1155 = vrot.slane %v994, 1
    %v1156 = vrot.slane %v756, 1
    %v1157 = vsel %vm1114, %v1155, %v1156
    %v1158 = vrot.slane %v1026, 1
    %v1159 = vsel %vm1114, %v1156, %v1158
    %v1160 = vrot.slane %v995, 1
    %v1161 = vrot.slane %v759, 1
    %v1162 = vsel %vm1114, %v1160, %v1161
    %v1163 = vrot.slane %v1027, 1
    %v1164 = vsel %vm1114, %v1161, %v1163
    %v1165 = vrot.slane %v996, 1
    %v1166 = vrot.slane %v762, 1
    %v1167 = vsel %vm1114, %v1165, %v1166
    %v1168 = vrot.slane %v1028, 1
    %v1169 = vsel %vm1114, %v1166, %v1168
    %v1170 = vrot.slane %v997, 1
    %v1171 = vrot.slane %v765, 1
    %v1172 = vsel %vm1114, %v1170, %v1171
    %v1173 = vrot.slane %v1029, 1
    %v1174 = vsel %vm1114, %v1171, %v1173
    %v1175 = vrot.slane %v998, 1
    %v1176 = vrot.slane %v768, 1
    %v1177 = vsel %vm1114, %v1175, %v1176
    %v1178 = vrot.slane %v1030, 1
    %v1179 = vsel %vm1114, %v1176, %v1178
    %v1180 = vrot.slane %v999, 1
    %v1181 = vrot.slane %v771, 1
    %v1182 = vsel %vm1114, %v1180, %v1181
    %v1183 = vrot.slane %v1031, 1
    %v1184 = vsel %vm1114, %v1181, %v1183
    %v1185 = vrot.slane %v1000, 1
    %v1186 = vrot.slane %v774, 1
    %v1187 = vsel %vm1114, %v1185, %v1186
    %v1188 = vrot.slane %v1032, 1
    %v1189 = vsel %vm1114, %v1186, %v1188
    %v1190 = vrot.slane %v1001, 1
    %v1191 = vrot.slane %v777, 1
    %v1192 = vsel %vm1114, %v1190, %v1191
    %v1193 = vrot.slane %v1033, 1
    %v1194 = vsel %vm1114, %v1191, %v1193
    %v1195 = vrot.slane %v1002, 1
    %v1196 = vrot.slane %v780, 1
    %v1197 = vsel %vm1114, %v1195, %v1196
    %v1198 = vrot.slane %v1034, 1
    %v1199 = vsel %vm1114, %v1196, %v1198
    %v1200 = vrot.slane %v1003, 1
    %v1201 = vrot.slane %v783, 1
    %v1202 = vsel %vm1114, %v1200, %v1201
    %v1203 = vrot.slane %v1035, 1
    %v1204 = vsel %vm1114, %v1201, %v1203
    %v1205 = vrot.slane %v1004, 1
    %v1206 = vrot.slane %v786, 1
    %v1207 = vsel %vm1114, %v1205, %v1206
    %v1208 = vrot.slane %v1036, 1
    %v1209 = vsel %vm1114, %v1206, %v1208
    %v1210 = vrot.slane %v1005, 1
    %v1211 = vrot.slane %v789, 1
    %v1212 = vsel %vm1114, %v1210, %v1211
    %v1213 = vrot.slane %v1037, 1
    %v1214 = vsel %vm1114, %v1211, %v1213
    %v1215 = vrot.slane %v1006, 1
    %v1216 = vrot.slane %v792, 1
    %v1217 = vsel %vm1114, %v1215, %v1216
    %v1218 = vrot.slane %v1038, 1
    %v1219 = vsel %vm1114, %v1216, %v1218
    %v1220 = vrot.slane %v1007, 1
    %v1221 = vrot.slane %v795, 1
    %v1222 = vsel %vm1114, %v1220, %v1221
    %v1223 = vrot.slane %v1039, 1
    %v1224 = vsel %vm1114, %v1221, %v1223
    %v1225 = vrot.slane %v1008, 1
    %v1226 = vrot.slane %v798, 1
    %v1227 = vsel %vm1114, %v1225, %v1226
    %v1228 = vrot.slane %v1040, 1
    %v1229 = vsel %vm1114, %v1226, %v1228
    %v1230 = vrot.slane %v1009, 1
    %v1231 = vrot.slane %v801, 1
    %v1232 = vsel %vm1114, %v1230, %v1231
    %v1233 = vrot.slane %v1041, 1
    %v1234 = vsel %vm1114, %v1231, %v1233
    %v1235 = vrot.slane %v1010, 1
    %v1236 = vrot.slane %v804, 1
    %v1237 = vsel %vm1114, %v1235, %v1236
    %v1238 = vrot.slane %v1042, 1
    %v1239 = vsel %vm1114, %v1236, %v1238
    %v1240 = vrot.slane %v1011, 1
    %v1241 = vrot.slane %v807, 1
    %v1242 = vsel %vm1114, %v1240, %v1241
    %v1243 = vrot.slane %v1043, 1
    %v1244 = vsel %vm1114, %v1241, %v1243
    %v1245 = vrot.slane %v1012, 1
    %v1246 = vrot.slane %v810, 1
    %v1247 = vsel %vm1114, %v1245, %v1246
    %v1248 = vrot.slane %v1044, 1
    %v1249 = vsel %vm1114, %v1246, %v1248
    %v1250 = vrot.slane %v1013, 1
    %v1251 = vrot.slane %v813, 1
    %v1252 = vsel %vm1114, %v1250, %v1251
    %v1253 = vrot.slane %v1045, 1
    %v1254 = vsel %vm1114, %v1251, %v1253
    %v1255 = vrot.slane %v1014, 1
    %v1256 = vrot.slane %v816, 1
    %v1257 = vsel %vm1114, %v1255, %v1256
    %v1258 = vrot.slane %v1046, 1
    %v1259 = vsel %vm1114, %v1256, %v1258
    %v1260 = vrot.slane %v1015, 1
    %v1261 = vrot.slane %v819, 1
    %v1262 = vsel %vm1114, %v1260, %v1261
    %v1263 = vrot.slane %v1047, 1
    %v1264 = vsel %vm1114, %v1261, %v1263
    %v1265 = vrot.slane %v1016, 1
    %v1266 = vrot.slane %v822, 1
    %v1267 = vsel %vm1114, %v1265, %v1266
    %v1268 = vrot.slane %v1048, 1
    %v1269 = vsel %vm1114, %v1266, %v1268
    %v1270 = vrot.slane %v1017, 1
    %v1271 = vrot.slane %v825, 1
    %v1272 = vsel %vm1114, %v1270, %v1271
    %v1273 = vrot.slane %v1049, 1
    %v1274 = vsel %vm1114, %v1271, %v1273
    %v1339 = vmax.f32 %v986, %v1117
    %v1340 = vmax.f32 %v732, %v1119
    %v1341 = vmax.f32 %v987, %v1122
    %v1342 = vmax.f32 %v735, %v1124
    %v1343 = vmax.f32 %v988, %v1127
    %v1344 = vmax.f32 %v738, %v1129
    %v1345 = vmax.f32 %v989, %v1132
    %v1346 = vmax.f32 %v741, %v1134
    %v1347 = vmax.f32 %v990, %v1137
    %v1348 = vmax.f32 %v744, %v1139
    %v1349 = vmax.f32 %v991, %v1142
    %v1350 = vmax.f32 %v747, %v1144
    %v1351 = vmax.f32 %v992, %v1147
    %v1352 = vmax.f32 %v750, %v1149
    %v1353 = vmax.f32 %v993, %v1152
    %v1354 = vmax.f32 %v753, %v1154
    %v1355 = vmax.f32 %v994, %v1157
    %v1356 = vmax.f32 %v756, %v1159
    %v1357 = vmax.f32 %v995, %v1162
    %v1358 = vmax.f32 %v759, %v1164
    %v1359 = vmax.f32 %v996, %v1167
    %v1360 = vmax.f32 %v762, %v1169
    %v1361 = vmax.f32 %v997, %v1172
    %v1362 = vmax.f32 %v765, %v1174
    %v1363 = vmax.f32 %v998, %v1177
    %v1364 = vmax.f32 %v768, %v1179
    %v1365 = vmax.f32 %v999, %v1182
    %v1366 = vmax.f32 %v771, %v1184
    %v1367 = vmax.f32 %v1000, %v1187
    %v1368 = vmax.f32 %v774, %v1189
    %v1369 = vmax.f32 %v1001, %v1192
    %v1370 = vmax.f32 %v777, %v1194
    %v1371 = vmax.f32 %v1002, %v1197
    %v1372 = vmax.f32 %v780, %v1199
    %v1373 = vmax.f32 %v1003, %v1202
    %v1374 = vmax.f32 %v783, %v1204
    %v1375 = vmax.f32 %v1004, %v1207
    %v1376 = vmax.f32 %v786, %v1209
    %v1377 = vmax.f32 %v1005, %v1212
    %v1378 = vmax.f32 %v789, %v1214
    %v1379 = vmax.f32 %v1006, %v1217
    %v1380 = vmax.f32 %v792, %v1219
    %v1381 = vmax.f32 %v1007, %v1222
    %v1382 = vmax.f32 %v795, %v1224
    %v1383 = vmax.f32 %v1008, %v1227
    %v1384 = vmax.f32 %v798, %v1229
    %v1385 = vmax.f32 %v1009, %v1232
    %v1386 = vmax.f32 %v801, %v1234
    %v1387 = vmax.f32 %v1010, %v1237
    %v1388 = vmax.f32 %v804, %v1239
    %v1389 = vmax.f32 %v1011, %v1242
    %v1390 = vmax.f32 %v807, %v1244
    %v1391 = vmax.f32 %v1012, %v1247
    %v1392 = vmax.f32 %v810, %v1249
    %v1393 = vmax.f32 %v1013, %v1252
    %v1394 = vmax.f32 %v813, %v1254
    %v1395 = vmax.f32 %v1014, %v1257
    %v1396 = vmax.f32 %v816, %v1259
    %v1397 = vmax.f32 %v1015, %v1262
    %v1398 = vmax.f32 %v819, %v1264
    %v1399 = vmax.f32 %v1016, %v1267
    %v1400 = vmax.f32 %v822, %v1269
    %v1401 = vmax.f32 %v1017, %v1272
    %v1402 = vmax.f32 %v825, %v1274
    %vm1403 = vcmask 1045504
    %v1404 = vrot.slane %v986, 2
    %v1405 = vrot.slane %v732, 2
    %v1406 = vsel %vm1403, %v1404, %v1405
    %v1407 = vrot.slane %v1018, 2
    %v1408 = vsel %vm1403, %v1405, %v1407
    %v1409 = vrot.slane %v987, 2
    %v1410 = vrot.slane %v735, 2
    %v1411 = vsel %vm1403, %v1409, %v1410
    %v1412 = vrot.slane %v1019, 2
    %v1413 = vsel %vm1403, %v1410, %v1412
    %v1414 = vrot.slane %v988, 2
    %v1415 = vrot.slane %v738, 2
    %v1416 = vsel %vm1403, %v1414, %v1415
    %v1417 = vrot.slane %v1020, 2
    %v1418 = vsel %vm1403, %v1415, %v1417
    %v1419 = vrot.slane %v989, 2
    %v1420 = vrot.slane %v741, 2
    %v1421 = vsel %vm1403, %v1419, %v1420
    %v1422 = vrot.slane %v1021, 2
    %v1423 = vsel %vm1403, %v1420, %v1422
    %v1424 = vrot.slane %v990, 2
    %v1425 = vrot.slane %v744, 2
    %v1426 = vsel %vm1403, %v1424, %v1425
    %v1427 = vrot.slane %v1022, 2
    %v1428 = vsel %vm1403, %v1425, %v1427
    %v1429 = vrot.slane %v991, 2
    %v1430 = vrot.slane %v747, 2
    %v1431 = vsel %vm1403, %v1429, %v1430
    %v1432 = vrot.slane %v1023, 2
    %v1433 = vsel %vm1403, %v1430, %v1432
    %v1434 = vrot.slane %v992, 2
    %v1435 = vrot.slane %v750, 2
    %v1436 = vsel %vm1403, %v1434, %v1435
    %v1437 = vrot.slane %v1024, 2
    %v1438 = vsel %vm1403, %v1435, %v1437
    %v1439 = vrot.slane %v993, 2
    %v1440 = vrot.slane %v753, 2
    %v1441 = vsel %vm1403, %v1439, %v1440
    %v1442 = vrot.slane %v1025, 2
    %v1443 = vsel %vm1403, %v1440, %v1442
    %v1444 = vrot.slane %v994, 2
    %v1445 = vrot.slane %v756, 2
    %v1446 = vsel %vm1403, %v1444, %v1445
    %v1447 = vrot.slane %v1026, 2
    %v1448 = vsel %vm1403, %v1445, %v1447
    %v1449 = vrot.slane %v995, 2
    %v1450 = vrot.slane %v759, 2
    %v1451 = vsel %vm1403, %v1449, %v1450
    %v1452 = vrot.slane %v1027, 2
    %v1453 = vsel %vm1403, %v1450, %v1452
    %v1454 = vrot.slane %v996, 2
    %v1455 = vrot.slane %v762, 2
    %v1456 = vsel %vm1403, %v1454, %v1455
    %v1457 = vrot.slane %v1028, 2
    %v1458 = vsel %vm1403, %v1455, %v1457
    %v1459 = vrot.slane %v997, 2
    %v1460 = vrot.slane %v765, 2
    %v1461 = vsel %vm1403, %v1459, %v1460
    %v1462 = vrot.slane %v1029, 2
    %v1463 = vsel %vm1403, %v1460, %v1462
    %v1464 = vrot.slane %v998, 2
    %v1465 = vrot.slane %v768, 2
    %v1466 = vsel %vm1403, %v1464, %v1465
    %v1467 = vrot.slane %v1030, 2
    %v1468 = vsel %vm1403, %v1465, %v1467
    %v1469 = vrot.slane %v999, 2
    %v1470 = vrot.slane %v771, 2
    %v1471 = vsel %vm1403, %v1469, %v1470
    %v1472 = vrot.slane %v1031, 2
    %v1473 = vsel %vm1403, %v1470, %v1472
    %v1474 = vrot.slane %v1000, 2
    %v1475 = vrot.slane %v774, 2
    %v1476 = vsel %vm1403, %v1474, %v1475
    %v1477 = vrot.slane %v1032, 2
    %v1478 = vsel %vm1403, %v1475, %v1477
    %v1479 = vrot.slane %v1001, 2
    %v1480 = vrot.slane %v777, 2
    %v1481 = vsel %vm1403, %v1479, %v1480
    %v1482 = vrot.slane %v1033, 2
    %v1483 = vsel %vm1403, %v1480, %v1482
    %v1484 = vrot.slane %v1002, 2
    %v1485 = vrot.slane %v780, 2
    %v1486 = vsel %vm1403, %v1484, %v1485
    %v1487 = vrot.slane %v1034, 2
    %v1488 = vsel %vm1403, %v1485, %v1487
    %v1489 = vrot.slane %v1003, 2
    %v1490 = vrot.slane %v783, 2
    %v1491 = vsel %vm1403, %v1489, %v1490
    %v1492 = vrot.slane %v1035, 2
    %v1493 = vsel %vm1403, %v1490, %v1492
    %v1494 = vrot.slane %v1004, 2
    %v1495 = vrot.slane %v786, 2
    %v1496 = vsel %vm1403, %v1494, %v1495
    %v1497 = vrot.slane %v1036, 2
    %v1498 = vsel %vm1403, %v1495, %v1497
    %v1499 = vrot.slane %v1005, 2
    %v1500 = vrot.slane %v789, 2
    %v1501 = vsel %vm1403, %v1499, %v1500
    %v1502 = vrot.slane %v1037, 2
    %v1503 = vsel %vm1403, %v1500, %v1502
    %v1504 = vrot.slane %v1006, 2
    %v1505 = vrot.slane %v792, 2
    %v1506 = vsel %vm1403, %v1504, %v1505
    %v1507 = vrot.slane %v1038, 2
    %v1508 = vsel %vm1403, %v1505, %v1507
    %v1509 = vrot.slane %v1007, 2
    %v1510 = vrot.slane %v795, 2
    %v1511 = vsel %vm1403, %v1509, %v1510
    %v1512 = vrot.slane %v1039, 2
    %v1513 = vsel %vm1403, %v1510, %v1512
    %v1514 = vrot.slane %v1008, 2
    %v1515 = vrot.slane %v798, 2
    %v1516 = vsel %vm1403, %v1514, %v1515
    %v1517 = vrot.slane %v1040, 2
    %v1518 = vsel %vm1403, %v1515, %v1517
    %v1519 = vrot.slane %v1009, 2
    %v1520 = vrot.slane %v801, 2
    %v1521 = vsel %vm1403, %v1519, %v1520
    %v1522 = vrot.slane %v1041, 2
    %v1523 = vsel %vm1403, %v1520, %v1522
    %v1524 = vrot.slane %v1010, 2
    %v1525 = vrot.slane %v804, 2
    %v1526 = vsel %vm1403, %v1524, %v1525
    %v1527 = vrot.slane %v1042, 2
    %v1528 = vsel %vm1403, %v1525, %v1527
    %v1529 = vrot.slane %v1011, 2
    %v1530 = vrot.slane %v807, 2
    %v1531 = vsel %vm1403, %v1529, %v1530
    %v1532 = vrot.slane %v1043, 2
    %v1533 = vsel %vm1403, %v1530, %v1532
    %v1534 = vrot.slane %v1012, 2
    %v1535 = vrot.slane %v810, 2
    %v1536 = vsel %vm1403, %v1534, %v1535
    %v1537 = vrot.slane %v1044, 2
    %v1538 = vsel %vm1403, %v1535, %v1537
    %v1539 = vrot.slane %v1013, 2
    %v1540 = vrot.slane %v813, 2
    %v1541 = vsel %vm1403, %v1539, %v1540
    %v1542 = vrot.slane %v1045, 2
    %v1543 = vsel %vm1403, %v1540, %v1542
    %v1544 = vrot.slane %v1014, 2
    %v1545 = vrot.slane %v816, 2
    %v1546 = vsel %vm1403, %v1544, %v1545
    %v1547 = vrot.slane %v1046, 2
    %v1548 = vsel %vm1403, %v1545, %v1547
    %v1549 = vrot.slane %v1015, 2
    %v1550 = vrot.slane %v819, 2
    %v1551 = vsel %vm1403, %v1549, %v1550
    %v1552 = vrot.slane %v1047, 2
    %v1553 = vsel %vm1403, %v1550, %v1552
    %v1554 = vrot.slane %v1016, 2
    %v1555 = vrot.slane %v822, 2
    %v1556 = vsel %vm1403, %v1554, %v1555
    %v1557 = vrot.slane %v1048, 2
    %v1558 = vsel %vm1403, %v1555, %v1557
    %v1559 = vrot.slane %v1017, 2
    %v1560 = vrot.slane %v825, 2
    %v1561 = vsel %vm1403, %v1559, %v1560
    %v1562 = vrot.slane %v1049, 2
    %v1563 = vsel %vm1403, %v1560, %v1562
    %v1628 = vmax.f32 %v1339, %v1406
    %v1629 = vmax.f32 %v1340, %v1408
    %v1630 = vmax.f32 %v1341, %v1411
    %v1631 = vmax.f32 %v1342, %v1413
    %v1632 = vmax.f32 %v1343, %v1416
    %v1633 = vmax.f32 %v1344, %v1418
    %v1634 = vmax.f32 %v1345, %v1421
    %v1635 = vmax.f32 %v1346, %v1423
    %v1636 = vmax.f32 %v1347, %v1426
    %v1637 = vmax.f32 %v1348, %v1428
    %v1638 = vmax.f32 %v1349, %v1431
    %v1639 = vmax.f32 %v1350, %v1433
    %v1640 = vmax.f32 %v1351, %v1436
    %v1641 = vmax.f32 %v1352, %v1438
    %v1642 = vmax.f32 %v1353, %v1441
    %v1643 = vmax.f32 %v1354, %v1443
    %v1644 = vmax.f32 %v1355, %v1446
    %v1645 = vmax.f32 %v1356, %v1448
    %v1646 = vmax.f32 %v1357, %v1451
    %v1647 = vmax.f32 %v1358, %v1453
    %v1648 = vmax.f32 %v1359, %v1456
    %v1649 = vmax.f32 %v1360, %v1458
    %v1650 = vmax.f32 %v1361, %v1461
    %v1651 = vmax.f32 %v1362, %v1463
    %v1652 = vmax.f32 %v1363, %v1466
    %v1653 = vmax.f32 %v1364, %v1468
    %v1654 = vmax.f32 %v1365, %v1471
    %v1655 = vmax.f32 %v1366, %v1473
    %v1656 = vmax.f32 %v1367, %v1476
    %v1657 = vmax.f32 %v1368, %v1478
    %v1658 = vmax.f32 %v1369, %v1481
    %v1659 = vmax.f32 %v1370, %v1483
    %v1660 = vmax.f32 %v1371, %v1486
    %v1661 = vmax.f32 %v1372, %v1488
    %v1662 = vmax.f32 %v1373, %v1491
    %v1663 = vmax.f32 %v1374, %v1493
    %v1664 = vmax.f32 %v1375, %v1496
    %v1665 = vmax.f32 %v1376, %v1498
    %v1666 = vmax.f32 %v1377, %v1501
    %v1667 = vmax.f32 %v1378, %v1503
    %v1668 = vmax.f32 %v1379, %v1506
    %v1669 = vmax.f32 %v1380, %v1508
    %v1670 = vmax.f32 %v1381, %v1511
    %v1671 = vmax.f32 %v1382, %v1513
    %v1672 = vmax.f32 %v1383, %v1516
    %v1673 = vmax.f32 %v1384, %v1518
    %v1674 = vmax.f32 %v1385, %v1521
    %v1675 = vmax.f32 %v1386, %v1523
    %v1676 = vmax.f32 %v1387, %v1526
    %v1677 = vmax.f32 %v1388, %v1528
    %v1678 = vmax.f32 %v1389, %v1531
    %v1679 = vmax.f32 %v1390, %v1533
    %v1680 = vmax.f32 %v1391, %v1536
    %v1681 = vmax.f32 %v1392, %v1538
    %v1682 = vmax.f32 %v1393, %v1541
    %v1683 = vmax.f32 %v1394, %v1543
    %v1684 = vmax.f32 %v1395, %v1546
    %v1685 = vmax.f32 %v1396, %v1548
    %v1686 = vmax.f32 %v1397, %v1551
    %v1687 = vmax.f32 %v1398, %v1553
    %v1688 = vmax.f32 %v1399, %v1556
    %v1689 = vmax.f32 %v1400, %v1558
    %v1690 = vmax.f32 %v1401, %v1561
    %v1691 = vmax.f32 %v1402, %v1563
    %v1692 = vmax.f32 %v1628, %v1630
    %v1693 = vmax.f32 %v1629, %v1631
    %v1694 = vmax.f32 %v1630, %v1632
    %v1695 = vmax.f32 %v1631, %v1633
    %v1696 = vmax.f32 %v1632, %v1634
    %v1697 = vmax.f32 %v1633, %v1635
    %v1698 = vmax.f32 %v1634, %v1636
    %v1699 = vmax.f32 %v1635, %v1637
    %v1700 = vmax.f32 %v1636, %v1638
    %v1701 = vmax.f32 %v1637, %v1639
    %v1702 = vmax.f32 %v1638, %v1640
    %v1703 = vmax.f32 %v1639, %v1641
    %v1704 = vmax.f32 %v1640, %v1642
    %v1705 = vmax.f32 %v1641, %v1643
    %v1706 = vmax.f32 %v1642, %v1644
    %v1707 = vmax.f32 %v1643, %v1645
    %v1708 = vmax.f32 %v1644, %v1646
    %v1709 = vmax.f32 %v1645, %v1647
    %v1710 = vmax.f32 %v1646, %v1648
    %v1711 = vmax.f32 %v1647, %v1649
    %v1712 = vmax.f32 %v1648, %v1650
    %v1713 = vmax.f32 %v1649, %v1651
    %v1714 = vmax.f32 %v1650, %v1652
    %v1715 = vmax.f32 %v1651, %v1653
    %v1716 = vmax.f32 %v1652, %v1654
    %v1717 = vmax.f32 %v1653, %v1655
    %v1718 = vmax.f32 %v1654, %v1656
    %v1719 = vmax.f32 %v1655, %v1657
    %v1720 = vmax.f32 %v1656, %v1658
    %v1721 = vmax.f32 %v1657, %v1659
    %v1722 = vmax.f32 %v1660, %v1662
    %v1723 = vmax.f32 %v1661, %v1663
    %v1724 = vmax.f32 %v1662, %v1664
    %v1725 = vmax.f32 %v1663, %v1665
    %v1726 = vmax.f32 %v1664, %v1666
    %v1727 = vmax.f32 %v1665, %v1667
    %v1728 = vmax.f32 %v1666, %v1668
    %v1729 = vmax.f32 %v1667, %v1669
    %v1730 = vmax.f32 %v1668, %v1670
    %v1731 = vmax.f32 %v1669, %v1671
    %v1732 = vmax.f32 %v1670, %v1672
    %v1733 = vmax.f32 %v1671, %v1673
    %v1734 = vmax.f32 %v1672, %v1674
    %v1735 = vmax.f32 %v1673, %v1675
    %v1736 = vmax.f32 %v1674, %v1676
    %v1737 = vmax.f32 %v1675, %v1677
    %v1738 = vmax.f32 %v1676, %v1678
    %v1739 = vmax.f32 %v1677, %v1679
    %v1740 = vmax.f32 %v1678, %v1680
    %v1741 = vmax.f32 %v1679, %v1681
    %v1742 = vmax.f32 %v1680, %v1682
    %v1743 = vmax.f32 %v1681, %v1683
    %v1744 = vmax.f32 %v1682, %v1684
    %v1745 = vmax.f32 %v1683, %v1685
    %v1746 = vmax.f32 %v1684, %v1686
    %v1747 = vmax.f32 %v1685, %v1687
    %v1748 = vmax.f32 %v1686, %v1688
    %v1749 = vmax.f32 %v1687, %v1689
    %v1750 = vmax.f32 %v1688, %v1690
    %v1751 = vmax.f32 %v1689, %v1691
    %v1752 = vmax.f32 %v1692, %v1632
    %v1753 = vmax.f32 %v1693, %v1633
    %v1754 = vmax.f32 %v1694, %v1634
    %v1755 = vmax.f32 %v1695, %v1635
    %v1756 = vmax.f32 %v1696, %v1636
    %v1757 = vmax.f32 %v1697, %v1637
    %v1758 = vmax.f32 %v1698, %v1638
    %v1759 = vmax.f32 %v1699, %v1639
    %v1760 = vmax.f32 %v1700, %v1640
    %v1761 = vmax.f32 %v1701, %v1641
    %v1762 = vmax.f32 %v1702, %v1642
    %v1763 = vmax.f32 %v1703, %v1643
    %v1764 = vmax.f32 %v1704, %v1644
    %v1765 = vmax.f32 %v1705, %v1645
    %v1766 = vmax.f32 %v1706, %v1646
    %v1767 = vmax.f32 %v1707, %v1647
    %v1768 = vmax.f32 %v1708, %v1648
    %v1769 = vmax.f32 %v1709, %v1649
    %v1770 = vmax.f32 %v1710, %v1650
    %v1771 = vmax.f32 %v1711, %v1651
    %v1772 = vmax.f32 %v1712, %v1652
    %v1773 = vmax.f32 %v1713, %v1653
    %v1774 = vmax.f32 %v1714, %v1654
    %v1775 = vmax.f32 %v1715, %v1655
    %v1776 = vmax.f32 %v1716, %v1656
    %v1777 = vmax.f32 %v1717, %v1657
    %v1778 = vmax.f32 %v1718, %v1658
    %v1779 = vmax.f32 %v1719, %v1659
    %v1780 = vmax.f32 %v1720, %v1658
    %v1781 = vmax.f32 %v1721, %v1659
    %v1782 = vmax.f32 %v1722, %v1664
    %v1783 = vmax.f32 %v1723, %v1665
    %v1784 = vmax.f32 %v1724, %v1666
    %v1785 = vmax.f32 %v1725, %v1667
    %v1786 = vmax.f32 %v1726, %v1668
    %v1787 = vmax.f32 %v1727, %v1669
    %v1788 = vmax.f32 %v1728, %v1670
    %v1789 = vmax.f32 %v1729, %v1671
    %v1790 = vmax.f32 %v1730, %v1672
    %v1791 = vmax.f32 %v1731, %v1673
    %v1792 = vmax.f32 %v1732, %v1674
    %v1793 = vmax.f32 %v1733, %v1675
    %v1794 = vmax.f32 %v1734, %v1676
    %v1795 = vmax.f32 %v1735, %v1677
    %v1796 = vmax.f32 %v1736, %v1678
    %v1797 = vmax.f32 %v1737, %v1679
    %v1798 = vmax.f32 %v1738, %v1680
    %v1799 = vmax.f32 %v1739, %v1681
    %v1800 = vmax.f32 %v1740, %v1682
    %v1801 = vmax.f32 %v1741, %v1683
    %v1802 = vmax.f32 %v1742, %v1684
    %v1803 = vmax.f32 %v1743, %v1685
    %v1804 = vmax.f32 %v1744, %v1686
    %v1805 = vmax.f32 %v1745, %v1687
    %v1806 = vmax.f32 %v1746, %v1688
    %v1807 = vmax.f32 %v1747, %v1689
    %v1808 = vmax.f32 %v1748, %v1690
    %v1809 = vmax.f32 %v1749, %v1691
    %v1810 = vmax.f32 %v1750, %v1690
    %v1811 = vmax.f32 %v1751, %v1691
    %v1812 = vld [vmem:[%s2] sm:$0xff]
    %v1813 = vld [vmem:[%s2 + $0x8] sm:$0xff]
    %v1814 = vld [vmem:[%s2 + $0x10] sm:$0xff]
    %v1815 = vld [vmem:[%s2 + $0x18] sm:$0xff]
    %v1816 = vld [vmem:[%s2 + $0x20] sm:$0xff]
    %v1817 = vld [vmem:[%s2 + $0x28] sm:$0xff]
    %v1818 = vld [vmem:[%s2 + $0x30] sm:$0xff]
    %v1819 = vld [vmem:[%s2 + $0x38] sm:$0xff]
    %v1820 = vld [vmem:[%s2 + $0x40] sm:$0xff]
    %v1821 = vld [vmem:[%s2 + $0x48] sm:$0xff]
    %v1822 = vld [vmem:[%s2 + $0x50] sm:$0xff]
    %v1823 = vld [vmem:[%s2 + $0x58] sm:$0xff]
    %v1824 = vld [vmem:[%s2 + $0x60] sm:$0xff]
    %v1825 = vld [vmem:[%s2 + $0x68] sm:$0xff]
    %v1826 = vld [vmem:[%s2 + $0x70] sm:$0xff]
    %v1827 = vld [vmem:[%s2 + $0x78] sm:$0xff]
    %1828 = vmatprep.subr.mxu0 0.0
    %1829 = vmatpush1.msra.mxu0 %v1692
    %1830 = vmatprep.subr.mxu0 0.0
    %1831 = vmatpush1.msra.mxu0 %v1693
    %1832 = vmatprep.subr.mxu0 0.0
    %1833 = vmatpush1.msra.mxu0 %v1752
    %1834 = vmatprep.subr.mxu0 0.0
    %1835 = vmatpush1.msra.mxu0 %v1753
    %1836 = vmatprep.subr.mxu0 0.0
    %1837 = vmatpush1.msra.mxu0 %v1754
    %1838 = vmatprep.subr.mxu0 0.0
    %1839 = vmatpush1.msra.mxu0 %v1755
    %1840 = vmatprep.subr.mxu0 0.0
    %1841 = vmatpush1.msra.mxu0 %v1756
    %1842 = vmatprep.subr.mxu0 0.0
    %1843 = vmatpush1.msra.mxu0 %v1757
    %1844 = vmatprep.subr.mxu0 0.0
    %1845 = vmatpush1.msra.mxu0 %v1758
    %1846 = vmatprep.subr.mxu0 0.0
    %1847 = vmatpush1.msra.mxu0 %v1759
    %1848 = vmatprep.subr.mxu0 0.0
    %1849 = vmatpush1.msra.mxu0 %v1760
    %1850 = vmatprep.subr.mxu0 0.0
    %1851 = vmatpush1.msra.mxu0 %v1761
    %1852 = vmatprep.subr.mxu0 0.0
    %1853 = vmatpush1.msra.mxu0 %v1762
    %1854 = vmatprep.subr.mxu0 0.0
    %1855 = vmatpush1.msra.mxu0 %v1763
    %1856 = vmatprep.subr.mxu0 0.0
    %1857 = vmatpush1.msra.mxu0 %v1764
    %1858 = vmatprep.subr.mxu0 0.0
    %1859 = vmatpush1.msra.mxu0 %v1765
    %1860 = vmatprep.subr.mxu0 0.0
    %1861 = vmatpush1.msra.mxu0 %v1766
    %1862 = vmatprep.subr.mxu0 0.0
    %1863 = vmatpush1.msra.mxu0 %v1767
    %1864 = vmatprep.subr.mxu0 0.0
    %1865 = vmatpush1.msra.mxu0 %v1768
    %1866 = vmatprep.subr.mxu0 0.0
    %1867 = vmatpush1.msra.mxu0 %v1769
    %1868 = vmatprep.subr.mxu0 0.0
    %1869 = vmatpush1.msra.mxu0 %v1770
    %1870 = vmatprep.subr.mxu0 0.0
    %1871 = vmatpush1.msra.mxu0 %v1771
    %1872 = vmatprep.subr.mxu0 0.0
    %1873 = vmatpush1.msra.mxu0 %v1772
    %1874 = vmatprep.subr.mxu0 0.0
    %1875 = vmatpush1.msra.mxu0 %v1773
    %1876 = vmatprep.subr.mxu0 0.0
    %1877 = vmatpush1.msra.mxu0 %v1774
    %1878 = vmatprep.subr.mxu0 0.0
    %1879 = vmatpush1.msra.mxu0 %v1775
    %1880 = vmatprep.subr.mxu0 0.0
    %1881 = vmatpush1.msra.mxu0 %v1776
    %1882 = vmatprep.subr.mxu0 0.0
    %1883 = vmatpush1.msra.mxu0 %v1777
    %1884 = vmatprep.subr.mxu0 0.0
    %1885 = vmatpush1.msra.mxu0 %v1778
    %1886 = vmatprep.subr.mxu0 0.0
    %1887 = vmatpush1.msra.mxu0 %v1779
    %1888 = vmatprep.subr.mxu0 0.0
    %1889 = vmatpush1.msra.mxu0 %v1780
    %1890 = vmatprep.subr.mxu0 0.0
    %1891 = vmatpush1.msra.mxu0 %v1781
    %1892 = vmatprep.mubr.f32.mxu0 %v1813
    %1893 = vmatmul.mubr.f32.gmra.mrb[0].mxu0 %v1812
    %v1894 = vpop.f32.mrb[0].mxu0
    %v1895 = vadd.f32 0.0, %v1894
    %v1896 = vpop.f32.mrb[0].mxu0
    %1897 = vmatprep.mubr.f32.mxu0 %v1815
    %1898 = vmatmul.mubr.f32.gmra.mrb[0].mxu0 %v1814
    %v1899 = vpop.f32.mrb[0].mxu0
    %v1900 = vadd.f32 0.0, %v1899
    %v1901 = vpop.f32.mrb[0].mxu0
    %1902 = vmatprep.mubr.f32.mxu0 %v1817
    %1903 = vmatmul.mubr.f32.gmra.mrb[0].mxu0 %v1816
    %v1904 = vpop.f32.mrb[0].mxu0
    %v1905 = vadd.f32 0.0, %v1904
    %v1906 = vpop.f32.mrb[0].mxu0
    %1907 = vmatprep.mubr.f32.mxu0 %v1819
    %1908 = vmatmul.mubr.f32.gmra.mrb[0].mxu0 %v1818
    %v1909 = vpop.f32.mrb[0].mxu0
    %v1910 = vadd.f32 0.0, %v1909
    %v1911 = vpop.f32.mrb[0].mxu0
    %1912 = vmatprep.mubr.f32.mxu0 %v1821
    %1913 = vmatmul.mubr.f32.gmra.mrb[0].mxu0 %v1820
    %v1914 = vpop.f32.mrb[0].mxu0
    %v1915 = vadd.f32 0.0, %v1914
    %v1916 = vpop.f32.mrb[0].mxu0
    %1917 = vmatprep.mubr.f32.mxu0 %v1823
    %1918 = vmatmul.mubr.f32.gmra.mrb[0].mxu0 %v1822
    %v1919 = vpop.f32.mrb[0].mxu0
    %v1920 = vadd.f32 0.0, %v1919
    %v1921 = vpop.f32.mrb[0].mxu0
    %1922 = vmatprep.mubr.f32.mxu0 %v1825
    %1923 = vmatmul.mubr.f32.gmra.mrb[0].mxu0 %v1824
    %v1924 = vpop.f32.mrb[0].mxu0
    %v1925 = vadd.f32 0.0, %v1924
    %v1926 = vpop.f32.mrb[0].mxu0
    %1927 = vmatprep.mubr.f32.mxu0 %v1827
    %1928 = vmatmul.mubr.f32.gmra.mrb[0].mxu0 %v1826
    %v1929 = vpop.f32.mrb[0].mxu0
    %v1930 = vadd.f32 0.0, %v1929
    %v1931 = vpop.f32.mrb[0].mxu0
    %1932 = vdwg.mxu0
    %1933 = vst [vmem:[#allocation2] sm:$0xff] %v1895
    %1934 = vst [vmem:[#allocation2 + $0x8] sm:$0xff] %v1900
    %1935 = vst [vmem:[#allocation2 + $0x10] sm:$0xff] %v1905
    %1936 = vst [vmem:[#allocation2 + $0x18] sm:$0xff] %v1910
    %1937 = vst [vmem:[#allocation2 + $0x20] sm:$0xff] %v1915
    %1938 = vst [vmem:[#allocation2 + $0x28] sm:$0xff] %v1920
    %1939 = vst [vmem:[#allocation2 + $0x30] sm:$0xff] %v1925
    %1940 = vst [vmem:[#allocation2 + $0x38] sm:$0xff] %v1930
    %v1941 = vld [vmem:[%s2] sm:$0xff]
    %v1942 = vld [vmem:[%s2 + $0x8] sm:$0xff]
    %v1943 = vld [vmem:[%s2 + $0x10] sm:$0xff]
    %v1944 = vld [vmem:[%s2 + $0x18] sm:$0xff]
    %v1945 = vld [vmem:[%s2 + $0x20] sm:$0xff]
    %v1946 = vld [vmem:[%s2 + $0x28] sm:$0xff]
    %v1947 = vld [vmem:[%s2 + $0x30] sm:$0xff]
    %v1948 = vld [vmem:[%s2 + $0x38] sm:$0xff]
    %v1949 = vld [vmem:[%s2 + $0x40] sm:$0xff]
    %v1950 = vld [vmem:[%s2 + $0x48] sm:$0xff]
    %v1951 = vld [vmem:[%s2 + $0x50] sm:$0xff]
    %v1952 = vld [vmem:[%s2 + $0x58] sm:$0xff]
    %v1953 = vld [vmem:[%s2 + $0x60] sm:$0xff]
    %v1954 = vld [vmem:[%s2 + $0x68] sm:$0xff]
    %v1955 = vld [vmem:[%s2 + $0x70] sm:$0xff]
    %v1956 = vld [vmem:[%s2 + $0x78] sm:$0xff]
    %1957 = vmatprep.subr.mxu0 0.0
    %1958 = vmatpush1.msra.mxu0 %v1722
    %1959 = vmatprep.subr.mxu0 0.0
    %1960 = vmatpush1.msra.mxu0 %v1723
    %1961 = vmatprep.subr.mxu0 0.0
    %1962 = vmatpush1.msra.mxu0 %v1782
    %1963 = vmatprep.subr.mxu0 0.0
    %1964 = vmatpush1.msra.mxu0 %v1783
    %1965 = vmatprep.subr.mxu0 0.0
    %1966 = vmatpush1.msra.mxu0 %v1784
    %1967 = vmatprep.subr.mxu0 0.0
    %1968 = vmatpush1.msra.mxu0 %v1785
    %1969 = vmatprep.subr.mxu0 0.0
    %1970 = vmatpush1.msra.mxu0 %v1786
    %1971 = vmatprep.subr.mxu0 0.0
    %1972 = vmatpush1.msra.mxu0 %v1787
    %1973 = vmatprep.subr.mxu0 0.0
    %1974 = vmatpush1.msra.mxu0 %v1788
    %1975 = vmatprep.subr.mxu0 0.0
    %1976 = vmatpush1.msra.mxu0 %v1789
    %1977 = vmatprep.subr.mxu0 0.0
    %1978 = vmatpush1.msra.mxu0 %v1790
    %1979 = vmatprep.subr.mxu0 0.0
    %1980 = vmatpush1.msra.mxu0 %v1791
    %1981 = vmatprep.subr.mxu0 0.0
    %1982 = vmatpush1.msra.mxu0 %v1792
    %1983 = vmatprep.subr.mxu0 0.0
    %1984 = vmatpush1.msra.mxu0 %v1793
    %1985 = vmatprep.subr.mxu0 0.0
    %1986 = vmatpush1.msra.mxu0 %v1794
    %1987 = vmatprep.subr.mxu0 0.0
    %1988 = vmatpush1.msra.mxu0 %v1795
    %1989 = vmatprep.subr.mxu0 0.0
    %1990 = vmatpush1.msra.mxu0 %v1796
    %1991 = vmatprep.subr.mxu0 0.0
    %1992 = vmatpush1.msra.mxu0 %v1797
    %1993 = vmatprep.subr.mxu0 0.0
    %1994 = vmatpush1.msra.mxu0 %v1798
    %1995 = vmatprep.subr.mxu0 0.0
    %1996 = vmatpush1.msra.mxu0 %v1799
    %1997 = vmatprep.subr.mxu0 0.0
    %1998 = vmatpush1.msra.mxu0 %v1800
    %1999 = vmatprep.subr.mxu0 0.0
    %2000 = vmatpush1.msra.mxu0 %v1801
    %2001 = vmatprep.subr.mxu0 0.0
    %2002 = vmatpush1.msra.mxu0 %v1802
    %2003 = vmatprep.subr.mxu0 0.0
    %2004 = vmatpush1.msra.mxu0 %v1803
    %2005 = vmatprep.subr.mxu0 0.0
    %2006 = vmatpush1.msra.mxu0 %v1804
    %2007 = vmatprep.subr.mxu0 0.0
    %2008 = vmatpush1.msra.mxu0 %v1805
    %2009 = vmatprep.subr.mxu0 0.0
    %2010 = vmatpush1.msra.mxu0 %v1806
    %2011 = vmatprep.subr.mxu0 0.0
    %2012 = vmatpush1.msra.mxu0 %v1807
    %2013 = vmatprep.subr.mxu0 0.0
    %2014 = vmatpush1.msra.mxu0 %v1808
    %2015 = vmatprep.subr.mxu0 0.0
    %2016 = vmatpush1.msra.mxu0 %v1809
    %2017 = vmatprep.subr.mxu0 0.0
    %2018 = vmatpush1.msra.mxu0 %v1810
    %2019 = vmatprep.subr.mxu0 0.0
    %2020 = vmatpush1.msra.mxu0 %v1811
    %2021 = vmatprep.mubr.f32.mxu0 %v1942
    %2022 = vmatmul.mubr.f32.gmra.mrb[0].mxu0 %v1941
    %v2023 = vpop.f32.mrb[0].mxu0
    %v2024 = vadd.f32 0.0, %v2023
    %v2025 = vpop.f32.mrb[0].mxu0
    %2026 = vmatprep.mubr.f32.mxu0 %v1944
    %2027 = vmatmul.mubr.f32.gmra.mrb[0].mxu0 %v1943
    %v2028 = vpop.f32.mrb[0].mxu0
    %v2029 = vadd.f32 0.0, %v2028
    %v2030 = vpop.f32.mrb[0].mxu0
    %2031 = vmatprep.mubr.f32.mxu0 %v1946
    %2032 = vmatmul.mubr.f32.gmra.mrb[0].mxu0 %v1945
    %v2033 = vpop.f32.mrb[0].mxu0
    %v2034 = vadd.f32 0.0, %v2033
    %v2035 = vpop.f32.mrb[0].mxu0
    %2036 = vmatprep.mubr.f32.mxu0 %v1948
    %2037 = vmatmul.mubr.f32.gmra.mrb[0].mxu0 %v1947
    %v2038 = vpop.f32.mrb[0].mxu0
    %v2039 = vadd.f32 0.0, %v2038
    %v2040 = vpop.f32.mrb[0].mxu0
    %2041 = vmatprep.mubr.f32.mxu0 %v1950
    %2042 = vmatmul.mubr.f32.gmra.mrb[0].mxu0 %v1949
    %v2043 = vpop.f32.mrb[0].mxu0
    %v2044 = vadd.f32 0.0, %v2043
    %v2045 = vpop.f32.mrb[0].mxu0
    %2046 = vmatprep.mubr.f32.mxu0 %v1952
    %2047 = vmatmul.mubr.f32.gmra.mrb[0].mxu0 %v1951
    %v2048 = vpop.f32.mrb[0].mxu0
    %v2049 = vadd.f32 0.0, %v2048
    %v2050 = vpop.f32.mrb[0].mxu0
    %2051 = vmatprep.mubr.f32.mxu0 %v1954
    %2052 = vmatmul.mubr.f32.gmra.mrb[0].mxu0 %v1953
    %v2053 = vpop.f32.mrb[0].mxu0
    %v2054 = vadd.f32 0.0, %v2053
    %v2055 = vpop.f32.mrb[0].mxu0
    %2056 = vmatprep.mubr.f32.mxu0 %v1956
    %2057 = vmatmul.mubr.f32.gmra.mrb[0].mxu0 %v1955
    %v2058 = vpop.f32.mrb[0].mxu0
    %v2059 = vadd.f32 0.0, %v2058
    %v2060 = vpop.f32.mrb[0].mxu0
    %2061 = vdwg.mxu0
    %s2062 = scalar_lea.vmem [#allocation2], 64
    %2063 = vst [vmem:[%s2062] sm:$0xff] %v2024
    %2064 = vst [vmem:[%s2062 + $0x8] sm:$0xff] %v2029
    %2065 = vst [vmem:[%s2062 + $0x10] sm:$0xff] %v2034
    %2066 = vst [vmem:[%s2062 + $0x18] sm:$0xff] %v2039
    %2067 = vst [vmem:[%s2062 + $0x20] sm:$0xff] %v2044
    %2068 = vst [vmem:[%s2062 + $0x28] sm:$0xff] %v2049
    %2069 = vst [vmem:[%s2062 + $0x30] sm:$0xff] %v2054
    %2070 = vst [vmem:[%s2062 + $0x38] sm:$0xff] %v2059
    // Predicated region
    $region14: #{tpu_custom_call.1} parent=1 // pred_check
      _
    $region15: #{tpu_custom_call.1} parent=1 // pred_check_branch
      %2072 = sbr.rel (0) target = $region17
    $region16: #{tpu_custom_call.1} parent=1 // pred_region
      %s2074 = ssub.s32 2048, 2048
      %2075 = vsyncadd [#allocation3], %s2074
      %s2076 = sshll.u32 [#allocation2], 4
      %s2077 = int_to_ptr.vmem [resolvable:$true] %s2076
      %2082 = dma.vmem_to_hbm [thread:$0]  %s2077, 2048, %s3, [#allocation3], 128, 128, 8
    $region17: #{tpu_custom_call.1} parent=1 // pred_fallthru
      _
    // Predicated region
    $region18: #{tpu_custom_call.1} parent=1 // pred_check
      _
    $region19: #{tpu_custom_call.1} parent=1 // pred_check_branch
      %2084 = sbr.rel (0) target = $region21
    $region20: #{tpu_custom_call.1} parent=1 // pred_region
      %2085 = dma.done [#allocation3], 2048
    $region21: #{tpu_custom_call.1} parent=1 // pred_fallthru
      _
    %2086 = vsyncpa [#allocation3], 1

</llo_original>
